<compile_context>
chip_gen: v5e
topology: v5e:2x2
jax: 0.10.0
libtpu: 0.0.40
codegen_flags: <defaults>
</compile_context>

<pallas_src>
import jax
import jax.numpy as jnp
from jax import lax
from jax.experimental import pallas as pl
from jax.experimental.pallas import tpu as pltpu


def _make_autorec_kernel(sub, n_sub):
    """Build the kernel body for a (tb = sub * n_sub)-row batch tile."""

    def autorec_kernel(x_ref, we_ref, be_ref, wd_ref, bd_ref, o_ref):
        # Weights/biases are VMEM-resident for the whole grid; load once.
        we = we_ref[...]
        be = be_ref[...].astype(jnp.float32)
        wd = wd_ref[...]
        bd = bd_ref[...].astype(jnp.float32)

        def body(i, carry):
            r0 = pl.multiple_of(i * sub, sub)
            xb = x_ref[pl.ds(r0, sub), :]                      # (sub, U) bf16
            # Encoder: (sub, U) @ (U, H), bf16 operands, f32 MXU accumulation.
            h = jnp.dot(xb, we, preferred_element_type=jnp.float32)
            # Sigmoid activation (EUP path), bias in f32.
            h = jax.nn.sigmoid(h + be)
            # Decoder: (sub, H) @ (H, U), bf16 operands, f32 MXU accumulation.
            y = jnp.dot(h.astype(wd.dtype), wd,
                        preferred_element_type=jnp.float32)
            o_ref[pl.ds(r0, sub), :] = (y + bd).astype(o_ref.dtype)
            return carry

        # Unrolled short loop: keeps h in vregs, gives the scheduler full
        # visibility, and avoids the VMEM spill of a (tb, H) f32 intermediate.
        lax.fori_loop(0, n_sub, body, None, unroll=True)

    return autorec_kernel


def autorec_forward(x, w_enc, b_enc, w_dec, b_dec, *, tb=256):
    """x: (B, U) bf16; w_enc: (U, H) bf16; b_enc: (1, H); w_dec: (H, U); b_dec: (1, U)."""
    B, U = x.shape
    H = w_enc.shape[1]

    # No host-side pad copy: shrink tb (powers of two, floor 8) until it
    # divides B.  Keeping >= 2 grid steps preserves 2-TC sharding on v7x.
    tb = min(tb, B)
    while B % tb and tb > 8:
        tb //= 2
    assert B % tb == 0, f"batch {B} must be divisible by a power-of-two tile (got tb={tb})"
    grid = (B // tb,)

    # 128-row sub-tiles inside the kernel (MXU-native M).
    sub = min(128, tb)
    assert tb % sub == 0
    n_sub = tb // sub

    # Advisory cost so XLA can schedule/overlap this custom call.
    weight_bytes = (w_enc.size * w_enc.dtype.itemsize
                    + b_enc.size * b_enc.dtype.itemsize
                    + w_dec.size * w_dec.dtype.itemsize
                    + b_dec.size * b_dec.dtype.itemsize)
    bytes_accessed = 2 * B * U * x.dtype.itemsize + weight_bytes   # x in + out
    cost = pl.CostEstimate(
        flops=4 * B * U * H,             # encoder + decoder matmuls
        transcendentals=B * H,           # sigmoid
        bytes_accessed=bytes_accessed,
    )

    # Raise the scoped-VMEM limit only if the resident footprint needs it.
    # Single-buffered weights + double-buffered x / out tiles.
    vmem_need = weight_bytes + 2 * 2 * tb * U * x.dtype.itemsize
    compiler_kwargs = dict(dimension_semantics=("parallel",))     # shard B across TCs (v7x)
    if vmem_need > (16 << 20):
        # TODO(synk): at real AutoRec scale (num_users ~ tens of thousands) on
        # v7x (64 MiB VMEM), stream w_dec in lane-dense column tiles (>=512)
        # and add an encoder K-reduction grid axis (f32 VMEM accumulator +
        # pl.when init/finalize, axis 'arbitrary' and last) instead of keeping
        # both weights fully resident; optionally store weights fp8 on v7x.
        compiler_kwargs["vmem_limit_bytes"] = min(vmem_need + (8 << 20), 96 << 20)

    const = pl.Buffered(1)   # single-buffer the grid-invariant blocks
    out = pl.pallas_call(
        _make_autorec_kernel(sub, n_sub),
        out_shape=jax.ShapeDtypeStruct((B, U), x.dtype),
        grid=grid,
        in_specs=[
            pl.BlockSpec((tb, U), lambda i: (i, 0)),                       # x: streamed B tiles
            pl.BlockSpec((U, H), lambda i: (0, 0), pipeline_mode=const),   # w_enc: resident
            pl.BlockSpec((1, H), lambda i: (0, 0), pipeline_mode=const),   # b_enc: resident
            pl.BlockSpec((H, U), lambda i: (0, 0), pipeline_mode=const),   # w_dec: resident
            pl.BlockSpec((1, U), lambda i: (0, 0), pipeline_mode=const),   # b_dec: resident
        ],
        out_specs=pl.BlockSpec((tb, U), lambda i: (i, 0)),
        compiler_params=pltpu.CompilerParams(**compiler_kwargs),
        cost_estimate=cost,
    )(x, w_enc, b_enc, w_dec, b_dec)

    return out


def reference_forward(x, w_enc, b_enc, w_dec, b_dec):
    # Mirrors the kernel's precision: bf16 operands, f32 accumulation, bf16 out.
    h = jnp.dot(x, w_enc, preferred_element_type=jnp.float32)
    h = jax.nn.sigmoid(h + b_enc.astype(jnp.float32))
    y = jnp.dot(h.astype(w_dec.dtype), w_dec, preferred_element_type=jnp.float32)
    return (y + b_dec.astype(jnp.float32)).astype(x.dtype)


if __name__ == "__main__":
    # Shapes implied by the module (hidden_dim default = 256), sized so the
    # B grid / MXU tiles are actually exercised while staying small:
    #   num_users  U = 256 (lane-dense, multiple of 128)
    #   hidden_dim H = 256 (module default, MXU-native)
    #   item batch B = 512 -> grid of 2 tiles of 256 (2 steps keeps both
    #                         TensorCores busy on v7x)
    B, U, H = 512, 256, 256

    key = jax.random.PRNGKey(0)
    kx, kwe, kbe, kwd, kbd = jax.random.split(key, 5)

    # bf16 activations end-to-end (producer stores bf16; no wrapper astype).
    x = jax.random.normal(kx, (B, U), dtype=jnp.float32).astype(jnp.bfloat16)

    # Deterministic synthetic parameters, stored (in, out) — transposed vs
    # torch.nn.Linear.weight — in bf16 (MXU peak-rate dtype).
    w_enc = (jax.random.normal(kwe, (U, H), dtype=jnp.float32) * 0.05).astype(jnp.bfloat16)
    b_enc = (jax.random.normal(kbe, (1, H), dtype=jnp.float32) * 0.05).astype(jnp.bfloat16)
    w_dec = (jax.random.normal(kwd, (H, U), dtype=jnp.float32) * 0.05).astype(jnp.bfloat16)
    b_dec = (jax.random.normal(kbd, (1, U), dtype=jnp.float32) * 0.05).astype(jnp.bfloat16)

    out = jax.block_until_ready(autorec_forward(x, w_enc, b_enc, w_dec, b_dec))
    ref = reference_forward(x, w_enc, b_enc, w_dec, b_dec)

    assert out.shape == (B, U)
    assert out.dtype == jnp.bfloat16
    max_err = float(jnp.max(jnp.abs(out.astype(jnp.float32) - ref.astype(jnp.float32))))
    assert max_err < 3e-2, f"mismatch vs reference: max abs err {max_err}"

    print("KERNEL_OK")
</pallas_src>

<mosaic_0001>
module attributes {stable_mosaic.version = 11 : i64} {
  func.func @autorec_kernel(%arg0: i32, %arg1: memref<256x256xbf16, #tpu.memory_space<vmem>>, %arg2: memref<256x256xbf16, #tpu.memory_space<vmem>>, %arg3: memref<1x256xbf16, #tpu.memory_space<vmem>>, %arg4: memref<256x256xbf16, #tpu.memory_space<vmem>>, %arg5: memref<1x256xbf16, #tpu.memory_space<vmem>>, %arg6: memref<256x256xbf16, #tpu.memory_space<vmem>>) attributes {dimension_semantics = [#tpu.dimension_semantics<parallel>], iteration_bounds = array<i64: 2>, scalar_prefetch = 0 : i64, scratch_operands = 0 : i64, tpu.core_type = #tpu.core_type<tc>, window_params = [{transform_indices = @transform_0, window_bounds = array<i64: 256, 256>}, {pipeline_mode = #tpu.pipeline_mode<synchronous>, transform_indices = @transform_1, window_bounds = array<i64: 256, 256>}, {pipeline_mode = #tpu.pipeline_mode<synchronous>, transform_indices = @transform_2, window_bounds = array<i64: 1, 256>}, {pipeline_mode = #tpu.pipeline_mode<synchronous>, transform_indices = @transform_3, window_bounds = array<i64: 256, 256>}, {pipeline_mode = #tpu.pipeline_mode<synchronous>, transform_indices = @transform_4, window_bounds = array<i64: 1, 256>}, {transform_indices = @transform_5, window_bounds = array<i64: 256, 256>}]} {
    %c0 = arith.constant 0 : index
    %c0_0 = arith.constant 0 : index
    %0 = vector.load %arg2[%c0, %c0_0] : memref<256x256xbf16, #tpu.memory_space<vmem>>, vector<256x256xbf16>
    %c0_1 = arith.constant 0 : index
    %c0_2 = arith.constant 0 : index
    %1 = vector.load %arg3[%c0_1, %c0_2] : memref<1x256xbf16, #tpu.memory_space<vmem>>, vector<1x256xbf16>
    %2 = arith.extf %1 : vector<1x256xbf16> to vector<1x256xf32>
    %c0_3 = arith.constant 0 : index
    %c0_4 = arith.constant 0 : index
    %3 = vector.load %arg4[%c0_3, %c0_4] : memref<256x256xbf16, #tpu.memory_space<vmem>>, vector<256x256xbf16>
    %c0_5 = arith.constant 0 : index
    %c0_6 = arith.constant 0 : index
    %4 = vector.load %arg5[%c0_5, %c0_6] : memref<1x256xbf16, #tpu.memory_space<vmem>>, vector<1x256xbf16>
    %5 = arith.extf %4 : vector<1x256xbf16> to vector<1x256xf32>
    %c0_i32 = arith.constant 0 : i32
    %c128_i32 = arith.constant 128 : i32
    %6 = arith.muli %c0_i32, %c128_i32 : i32
    %7 = tpu.assume_multiple %6, 128 : i32
    %8 = arith.index_cast %7 : i32 to index
    %c0_7 = arith.constant 0 : index
    %9 = vector.load %arg1[%8, %c0_7] : memref<256x256xbf16, #tpu.memory_space<vmem>>, vector<128x256xbf16>
    %cst = arith.constant dense<0.000000e+00> : vector<128x256xf32>
    %10 = tpu.matmul %9, %0, %cst {dimension_numbers = #tpu.dot_dimension_numbers<[1], [0], [0], [1], [0, 0, 1, 1], [], []>} : vector<128x256xbf16>, vector<256x256xbf16>, vector<128x256xf32> -> vector<128x256xf32>
    %11 = vector.broadcast %2 : vector<1x256xf32> to vector<128x256xf32>
    %12 = arith.addf %10, %11 : vector<128x256xf32>
    %13 = arith.negf %12 : vector<128x256xf32>
    %14 = math.exp %13 : vector<128x256xf32>
    %cst_8 = arith.constant 1.000000e+00 : f32
    %15 = vector.broadcast %cst_8 : f32 to vector<128x256xf32>
    %16 = arith.addf %15, %14 : vector<128x256xf32>
    %17 = arith.divf %15, %16 : vector<128x256xf32>
    %18 = arith.truncf %17 : vector<128x256xf32> to vector<128x256xbf16>
    %cst_9 = arith.constant dense<0.000000e+00> : vector<128x256xf32>
    %19 = tpu.matmul %18, %3, %cst_9 {dimension_numbers = #tpu.dot_dimension_numbers<[1], [0], [0], [1], [0, 0, 1, 1], [], []>} : vector<128x256xbf16>, vector<256x256xbf16>, vector<128x256xf32> -> vector<128x256xf32>
    %20 = vector.broadcast %5 : vector<1x256xf32> to vector<128x256xf32>
    %21 = arith.addf %19, %20 : vector<128x256xf32>
    %22 = arith.truncf %21 : vector<128x256xf32> to vector<128x256xbf16>
    %23 = arith.index_cast %7 : i32 to index
    %c0_10 = arith.constant 0 : index
    %24 = vector.load %arg6[%23, %c0_10] : memref<256x256xbf16, #tpu.memory_space<vmem>>, vector<128x256xbf16>
    tpu.vector_store %arg6[%23, %c0_10], %22 {strides = array<i32>} : memref<256x256xbf16, #tpu.memory_space<vmem>>, vector<128x256xbf16>,
    %c1_i32 = arith.constant 1 : i32
    %c128_i32_11 = arith.constant 128 : i32
    %25 = arith.muli %c1_i32, %c128_i32_11 : i32
    %26 = tpu.assume_multiple %25, 128 : i32
    %27 = arith.index_cast %26 : i32 to index
    %c0_12 = arith.constant 0 : index
    %28 = vector.load %arg1[%27, %c0_12] : memref<256x256xbf16, #tpu.memory_space<vmem>>, vector<128x256xbf16>
    %cst_13 = arith.constant dense<0.000000e+00> : vector<128x256xf32>
    %29 = tpu.matmul %28, %0, %cst_13 {dimension_numbers = #tpu.dot_dimension_numbers<[1], [0], [0], [1], [0, 0, 1, 1], [], []>} : vector<128x256xbf16>, vector<256x256xbf16>, vector<128x256xf32> -> vector<128x256xf32>
    %30 = vector.broadcast %2 : vector<1x256xf32> to vector<128x256xf32>
    %31 = arith.addf %29, %30 : vector<128x256xf32>
    %32 = arith.negf %31 : vector<128x256xf32>
    %33 = math.exp %32 : vector<128x256xf32>
    %cst_14 = arith.constant 1.000000e+00 : f32
    %34 = vector.broadcast %cst_14 : f32 to vector<128x256xf32>
    %35 = arith.addf %34, %33 : vector<128x256xf32>
    %36 = arith.divf %34, %35 : vector<128x256xf32>
    %37 = arith.truncf %36 : vector<128x256xf32> to vector<128x256xbf16>
    %cst_15 = arith.constant dense<0.000000e+00> : vector<128x256xf32>
    %38 = tpu.matmul %37, %3, %cst_15 {dimension_numbers = #tpu.dot_dimension_numbers<[1], [0], [0], [1], [0, 0, 1, 1], [], []>} : vector<128x256xbf16>, vector<256x256xbf16>, vector<128x256xf32> -> vector<128x256xf32>
    %39 = vector.broadcast %5 : vector<1x256xf32> to vector<128x256xf32>
    %40 = arith.addf %38, %39 : vector<128x256xf32>
    %41 = arith.truncf %40 : vector<128x256xf32> to vector<128x256xbf16>
    %42 = arith.index_cast %26 : i32 to index
    %c0_16 = arith.constant 0 : index
    %43 = vector.load %arg6[%42, %c0_16] : memref<256x256xbf16, #tpu.memory_space<vmem>>, vector<128x256xbf16>
    tpu.vector_store %arg6[%42, %c0_16], %41 {strides = array<i32>} : memref<256x256xbf16, #tpu.memory_space<vmem>>, vector<128x256xbf16>,
    %c2_i32 = arith.constant 2 : i32
    return
  }
  func.func @transform_0(%arg0: i32) -> (i32, i32) {
    %c0_i32 = arith.constant 0 : i32
    %c0_i32_0 = arith.constant 0 : i32
    return %arg0, %c0_i32 : i32, i32
  }
  func.func @transform_1(%arg0: i32) -> (i32, i32) {
    %c0_i32 = arith.constant 0 : i32
    %c0_i32_0 = arith.constant 0 : i32
    %c0_i32_1 = arith.constant 0 : i32
    return %c0_i32, %c0_i32_0 : i32, i32
  }
  func.func @transform_2(%arg0: i32) -> (i32, i32) {
    %c0_i32 = arith.constant 0 : i32
    %c0_i32_0 = arith.constant 0 : i32
    %c0_i32_1 = arith.constant 0 : i32
    return %c0_i32, %c0_i32_0 : i32, i32
  }
  func.func @transform_3(%arg0: i32) -> (i32, i32) {
    %c0_i32 = arith.constant 0 : i32
    %c0_i32_0 = arith.constant 0 : i32
    %c0_i32_1 = arith.constant 0 : i32
    return %c0_i32, %c0_i32_0 : i32, i32
  }
  func.func @transform_4(%arg0: i32) -> (i32, i32) {
    %c0_i32 = arith.constant 0 : i32
    %c0_i32_0 = arith.constant 0 : i32
    %c0_i32_1 = arith.constant 0 : i32
    return %c0_i32, %c0_i32_0 : i32, i32
  }
  func.func @transform_5(%arg0: i32) -> (i32, i32) {
    %c0_i32 = arith.constant 0 : i32
    %c0_i32_0 = arith.constant 0 : i32
    return %arg0, %c0_i32 : i32, i32
  }
}

</mosaic_0001>

<llo_original>
// kernel: tpu_custom_call.1
$region0: #{tpu_custom_call.1}
  #allocation0 [shape = 'u32[]', space=smem, size = 0x4, offset = 0x4, fixed_abs, tag = 'smem constant byte address 0x4 - core index']
  #allocation1 [shape = 'u32[72,128]{1,0:T(1,128)}', space=vmem, size = 0x9000, scoped, tag = 'internal scratch']
  %s0 = inlined_call_operand.hbm [shape: bf16[512,256], index: 0, kind: input, shape index: {}]
  %s1 = inlined_call_operand.hbm [shape: bf16[256,256], index: 1, kind: input, shape index: {}]
  %s2 = inlined_call_operand.hbm [shape: bf16[1,256], index: 2, kind: input, shape index: {}]
  %s3 = inlined_call_operand.hbm [shape: bf16[256,256], index: 3, kind: input, shape index: {}]
  %s4 = inlined_call_operand.vmem [shape: bf16[1,256], index: 4, kind: input, shape index: {}]
  %s5 = inlined_call_operand.hbm [shape: bf16[512,256], index: 5, kind: output, shape index: {}]
  %s6 = sld [smem:[#allocation0]]
  $region69: #{tpu_custom_call.1} parent=0
    _
  %s8 = ssub.s32 1, %s6
  %s9 = scalar_select 0, %s8, %s6
  $region1: #{tpu_custom_call.1} parent=0
    #allocation2 [shape = 'u8[262144]{0}', space=vmem, size = 0x40000, scoped, tag = 'input window, operand 0']
    #allocation3 [shape = 's32[2]{0}', space=sflag, size = 0x8, scoped, tag = 'scoped memory for tpu_custom_call.1']
    #allocation4 [shape = 's32[2]{0}', space=sflag, size = 0x8, scoped, tag = 'scoped memory for tpu_custom_call.1']
    #allocation5 [shape = 'u8[131072]{0}', space=vmem, size = 0x20000, scoped, tag = 'input window, operand 1, single buffered']
    #allocation6 [shape = 's32[1]{0}', space=sflag, size = 0x4, scoped, tag = 'scoped memory for tpu_custom_call.1']
    #allocation7 [shape = 'u8[1024]{0}', space=vmem, size = 0x400, scoped, tag = 'input window, operand 2, single buffered']
    #allocation8 [shape = 'u8[131072]{0}', space=vmem, size = 0x20000, scoped, tag = 'input window, operand 3, single buffered']
    #allocation9 [shape = 's32[1]{0}', space=sflag, size = 0x4, scoped, tag = 'scoped memory for tpu_custom_call.1']
    #allocation10 [shape = 'u8[262144]{0}', space=vmem, size = 0x40000, scoped, tag = 'output window, operand 0']
    %10 = vsyncpa [#allocation3], 0
    %s11 = scalar_lea.sflag [#allocation3], 1
    %12 = vsyncpa %s11, 0
    %13 = vsyncpa [#allocation6], 0
    %14 = vsyncpa [#allocation9], 0
    %15 = vsyncpa [#allocation4], 0
    %s16 = scalar_lea.sflag [#allocation4], 1
    %17 = vsyncpa %s16, 0
    loop: start=0, step=1, limit=4
    $region2: #{tpu_custom_call.1} parent=1 // loop_pre_header
      _
    $region3: #{tpu_custom_call.1} parent=1 // loop_header
      %s19 = sphi 0, %s23
      %p20 = scmp.ge.s32.totalorder %s19, 4
      %s29 = sphi 0, %s31
      %s32 = sphi 0, %s29
      %s33 = sphi 0, %s32
      %s49 = sphi 0, %s33
      %s53 = sphi 0, %s53
      %s55 = sphi 0, %s53
      %s56 = sphi 0, %s55
      %s70 = sphi 0, %s56
      %s74 = sphi 0, %s74
      %s76 = sphi 0, %s74
      %s77 = sphi 0, %s76
      %s91 = sphi 0, %s77
      %s95 = sphi 0, %s95
      %s97 = sphi 0, %s95
      %s98 = sphi 0, %s97
      %s112 = sphi 0, %s98
      %s116 = sphi 0, %s116
      %s118 = sphi 0, %s116
      %s119 = sphi 0, %s118
      %s133 = sphi 0, %s119
      %s139 = sphi 0, %s141
      %s142 = sphi 0, %s139
      %s143 = sphi 0, %s142
      %s159 = sphi 0, %s143
    $region4: #{tpu_custom_call.1} parent=1 // loop_header_branch
      %22 = sbr.rel (%p20) target = $region8
    $region5: #{tpu_custom_call.1} parent=1 // loop_body
      %s24 = ssub.s32 %s19, 1
      %s25 = ssub.s32 %s19, 2
      %s26 = sadd.s32 %s19, 1
      %s27 = ssub.s32 %s19, %s26
      %p28 = scmp.eq.s32.totalorder %s27, 0
      %s30 = sadd.s32 %s29, 1
      %s31 = scalar_select %p28, %s29, %s30
      %p34 = pneg %p28
      %p35 = scmp.eq.s32.totalorder %s19, 1
      %p36 = por %p34, %p35
      %p37 = scmp.ne.s32.totalorder %s29, %s32
      %p38 = scmp.eq.s32.totalorder %s19, 0
      %p39 = por %p37, %p38
      %p40 = scmp.ne.s32.totalorder %s29, %s32
      %p41 = scmp.eq.s32.totalorder %s24, 1
      %p42 = por %p40, %p41
      %p43 = scmp.ne.s32.totalorder %s32, %s33
      %p44 = scmp.eq.s32.totalorder %s24, 0
      %p45 = por %p43, %p44
      %p46 = scmp.ne.s32.totalorder %s32, %s33
      %p47 = scmp.eq.s32.totalorder %s25, 1
      %p48 = por %p46, %p47
      %p50 = scmp.ne.s32.totalorder %s33, %s49
      %p51 = scmp.eq.s32.totalorder %s25, 0
      %p52 = por %p50, %p51
      %s54 = sadd.s32 %s53, 1
      %p57 = scmp.eq.s32.totalorder %s19, 1
      %p58 = scmp.ne.s32.totalorder %s53, %s55
      %p59 = scmp.eq.s32.totalorder %s19, 0
      %p60 = por %p58, %p59
      %p61 = scmp.ne.s32.totalorder %s53, %s55
      %p62 = scmp.eq.s32.totalorder %s24, 1
      %p63 = por %p61, %p62
      %p64 = scmp.ne.s32.totalorder %s55, %s56
      %p65 = scmp.eq.s32.totalorder %s24, 0
      %p66 = por %p64, %p65
      %p67 = scmp.ne.s32.totalorder %s55, %s56
      %p68 = scmp.eq.s32.totalorder %s25, 1
      %p69 = por %p67, %p68
      %p71 = scmp.ne.s32.totalorder %s56, %s70
      %p72 = scmp.eq.s32.totalorder %s25, 0
      %p73 = por %p71, %p72
      %s75 = sadd.s32 %s74, 1
      %p78 = scmp.eq.s32.totalorder %s19, 1
      %p79 = scmp.ne.s32.totalorder %s74, %s76
      %p80 = scmp.eq.s32.totalorder %s19, 0
      %p81 = por %p79, %p80
      %p82 = scmp.ne.s32.totalorder %s74, %s76
      %p83 = scmp.eq.s32.totalorder %s24, 1
      %p84 = por %p82, %p83
      %p85 = scmp.ne.s32.totalorder %s76, %s77
      %p86 = scmp.eq.s32.totalorder %s24, 0
      %p87 = por %p85, %p86
      %p88 = scmp.ne.s32.totalorder %s76, %s77
      %p89 = scmp.eq.s32.totalorder %s25, 1
      %p90 = por %p88, %p89
      %p92 = scmp.ne.s32.totalorder %s77, %s91
      %p93 = scmp.eq.s32.totalorder %s25, 0
      %p94 = por %p92, %p93
      %s96 = sadd.s32 %s95, 1
      %p99 = scmp.eq.s32.totalorder %s19, 1
      %p100 = scmp.ne.s32.totalorder %s95, %s97
      %p101 = scmp.eq.s32.totalorder %s19, 0
      %p102 = por %p100, %p101
      %p103 = scmp.ne.s32.totalorder %s95, %s97
      %p104 = scmp.eq.s32.totalorder %s24, 1
      %p105 = por %p103, %p104
      %p106 = scmp.ne.s32.totalorder %s97, %s98
      %p107 = scmp.eq.s32.totalorder %s24, 0
      %p108 = por %p106, %p107
      %p109 = scmp.ne.s32.totalorder %s97, %s98
      %p110 = scmp.eq.s32.totalorder %s25, 1
      %p111 = por %p109, %p110
      %p113 = scmp.ne.s32.totalorder %s98, %s112
      %p114 = scmp.eq.s32.totalorder %s25, 0
      %p115 = por %p113, %p114
      %s117 = sadd.s32 %s116, 1
      %p120 = scmp.eq.s32.totalorder %s19, 1
      %p121 = scmp.ne.s32.totalorder %s116, %s118
      %p122 = scmp.eq.s32.totalorder %s19, 0
      %p123 = por %p121, %p122
      %p124 = scmp.ne.s32.totalorder %s116, %s118
      %p125 = scmp.eq.s32.totalorder %s24, 1
      %p126 = por %p124, %p125
      %p127 = scmp.ne.s32.totalorder %s118, %s119
      %p128 = scmp.eq.s32.totalorder %s24, 0
      %p129 = por %p127, %p128
      %p130 = scmp.ne.s32.totalorder %s118, %s119
      %p131 = scmp.eq.s32.totalorder %s25, 1
      %p132 = por %p130, %p131
      %p134 = scmp.ne.s32.totalorder %s119, %s133
      %p135 = scmp.eq.s32.totalorder %s25, 0
      %p136 = por %p134, %p135
      %s137 = ssub.s32 %s19, %s26
      %p138 = scmp.eq.s32.totalorder %s137, 0
      %s140 = sadd.s32 %s139, 1
      %s141 = scalar_select %p138, %s139, %s140
      %p144 = pneg %p138
      %p145 = scmp.eq.s32.totalorder %s19, 1
      %p146 = por %p144, %p145
      %p147 = scmp.ne.s32.totalorder %s139, %s142
      %p148 = scmp.eq.s32.totalorder %s19, 0
      %p149 = por %p147, %p148
      %p150 = scmp.ne.s32.totalorder %s139, %s142
      %p151 = scmp.eq.s32.totalorder %s24, 1
      %p152 = por %p150, %p151
      %p153 = scmp.ne.s32.totalorder %s142, %s143
      %p154 = scmp.eq.s32.totalorder %s24, 0
      %p155 = por %p153, %p154
      %p156 = scmp.ne.s32.totalorder %s142, %s143
      %p157 = scmp.eq.s32.totalorder %s25, 1
      %p158 = por %p156, %p157
      %p160 = scmp.ne.s32.totalorder %s143, %s159
      %p161 = scmp.eq.s32.totalorder %s25, 0
      %p162 = por %p160, %p161
      %p163 = scmp.le.s32.totalorder 1, %s19
      %p164 = scmp.lt.s32.totalorder %s19, 3
      %p165 = pnand %p163, %p164
      %p166 = pneg %p165
      // Predicated region
      $region9: #{tpu_custom_call.1} parent=5 // pred_check
        _
      $region10: #{tpu_custom_call.1} parent=5 // pred_check_branch
        %168 = sbr.rel (%p165) target = $region12
      $region11: #{tpu_custom_call.1} parent=5 // pred_region
        %s169 = ssub.s32 %s19, 1
        // Predicated region
        $region13: #{tpu_custom_call.1} parent=11 // pred_check
          %p170 = pneg %p66
        $region14: #{tpu_custom_call.1} parent=11 // pred_check_branch
          %172 = sbr.rel (%p170) target = $region16
        $region15: #{tpu_custom_call.1} parent=11 // pred_region
          %174 = vsyncadd [#allocation6], 0
          %s175 = sshll.u32 %s1, 4
          %s176 = int_to_ptr.hbm [resolvable:$true] %s175
          %s177 = sshll.u32 [#allocation5], 4
          %s178 = int_to_ptr.vmem [resolvable:$true] %s177
          %183 = dma.hbm_to_vmem [thread:$0]  %s176, 4096, %s178, [#allocation6], 128, 128, 8
        $region16: #{tpu_custom_call.1} parent=11 // pred_fallthru
          _
        // Predicated region
        $region17: #{tpu_custom_call.1} parent=11 // pred_check
          %p184 = pneg %p87
        $region18: #{tpu_custom_call.1} parent=11 // pred_check_branch
          %186 = sbr.rel (%p184) target = $region20
        $region19: #{tpu_custom_call.1} parent=11 // pred_region
          %188 = vsyncadd [#allocation6], 0
          %s190 = sshll.u32 %s2, 4
          %s191 = int_to_ptr.hbm [resolvable:$true] %s190
          %s192 = sshll.u32 [#allocation7], 4
          %s193 = int_to_ptr.vmem [resolvable:$true] %s192
          %195 = dma.hbm_to_vmem [thread:$0]  %s191, 32, %s193, [#allocation6]
        $region20: #{tpu_custom_call.1} parent=11 // pred_fallthru
          _
        // Predicated region
        $region21: #{tpu_custom_call.1} parent=11 // pred_check
          %p196 = pneg %p108
        $region22: #{tpu_custom_call.1} parent=11 // pred_check_branch
          %198 = sbr.rel (%p196) target = $region24
        $region23: #{tpu_custom_call.1} parent=11 // pred_region
          %200 = vsyncadd [#allocation9], 0
          %s201 = sshll.u32 %s3, 4
          %s202 = int_to_ptr.hbm [resolvable:$true] %s201
          %s203 = sshll.u32 [#allocation8], 4
          %s204 = int_to_ptr.vmem [resolvable:$true] %s203
          %209 = dma.hbm_to_vmem [thread:$0]  %s202, 4096, %s204, [#allocation9], 128, 128, 8
        $region24: #{tpu_custom_call.1} parent=11 // pred_fallthru
          _
        // Predicated region
        $region25: #{tpu_custom_call.1} parent=11 // pred_check
          %p210 = pneg %p129
        $region26: #{tpu_custom_call.1} parent=11 // pred_check_branch
          %212 = sbr.rel (%p210) target = $region28
        $region27: #{tpu_custom_call.1} parent=11 // pred_region
          _
        $region28: #{tpu_custom_call.1} parent=11 // pred_fallthru
          _
      $region12: #{tpu_custom_call.1} parent=5 // pred_fallthru
        _
      %p213 = scmp.lt.s32.totalorder %s19, 2
      // Predicated region
      $region29: #{tpu_custom_call.1} parent=5 // pred_check
        %p214 = pneg %p213
      $region30: #{tpu_custom_call.1} parent=5 // pred_check_branch
        %216 = sbr.rel (%p214) target = $region32
      $region31: #{tpu_custom_call.1} parent=5 // pred_region
        // Predicated region
        $region33: #{tpu_custom_call.1} parent=31 // pred_check
          %p217 = pneg %p39
        $region34: #{tpu_custom_call.1} parent=31 // pred_check_branch
          %219 = sbr.rel (%p217) target = $region36
        $region35: #{tpu_custom_call.1} parent=31 // pred_region
          %s220 = sand.u32 %s29, 1
          %s221 = scalar_lea.sflag [#allocation3], %s220
          %s222 = sand.u32 %s29, 1
          %s223 = smul.addr %s222, 256
          %s224 = scalar_lea.vmem [#allocation2], %s223
          %s225 = smul.u32 32, %s19
          %227 = vsyncadd %s221, 0
          %s228 = smul.addr %s225, 2
          %s229 = smul.addr %s228, 4
          %s230 = scalar_lea.hbm %s0, %s229
          %s231 = sshll.u32 %s230, 4
          %s232 = int_to_ptr.hbm [resolvable:$true] %s231
          %s233 = sshll.u32 %s224, 4
          %s234 = int_to_ptr.vmem [resolvable:$true] %s233
          %239 = dma.hbm_to_vmem [thread:$0]  %s232, 4096, %s234, %s221, 128, 128, 8
        $region36: #{tpu_custom_call.1} parent=31 // pred_fallthru
          _
      $region32: #{tpu_custom_call.1} parent=5 // pred_fallthru
        _
      %p240 = scmp.le.s32.totalorder 1, %s19
      %p241 = scmp.lt.s32.totalorder %s19, 3
      %p242 = pnand %p240, %p241
      %p243 = pneg %p242
      // Predicated region
      $region37: #{tpu_custom_call.1} parent=5 // pred_check
        _
      $region38: #{tpu_custom_call.1} parent=5 // pred_check_branch
        %245 = sbr.rel (%p242) target = $region40
      $region39: #{tpu_custom_call.1} parent=5 // pred_region
        %s246 = ssub.s32 %s19, 1
        %s247 = sand.u32 %s32, 1
        %s248 = scalar_lea.sflag [#allocation3], %s247
        %s249 = sand.u32 %s32, 1
        %s250 = smul.addr %s249, 256
        %s251 = scalar_lea.vmem [#allocation2], %s250
        // Predicated region
        $region41: #{tpu_custom_call.1} parent=39 // pred_check
          %p252 = pneg %p45
        $region42: #{tpu_custom_call.1} parent=39 // pred_check_branch
          %254 = sbr.rel (%p252) target = $region44
        $region43: #{tpu_custom_call.1} parent=39 // pred_region
          %256 = dma.done %s248, 4096
        $region44: #{tpu_custom_call.1} parent=39 // pred_fallthru
          _
        // Predicated region
        $region45: #{tpu_custom_call.1} parent=39 // pred_check
          %p257 = pneg %p66
        $region46: #{tpu_custom_call.1} parent=39 // pred_check_branch
          %259 = sbr.rel (%p257) target = $region48
        $region47: #{tpu_custom_call.1} parent=39 // pred_region
          %261 = dma.done [#allocation6], 4096
        $region48: #{tpu_custom_call.1} parent=39 // pred_fallthru
          _
        // Predicated region
        $region49: #{tpu_custom_call.1} parent=39 // pred_check
          %p262 = pneg %p87
        $region50: #{tpu_custom_call.1} parent=39 // pred_check_branch
          %264 = sbr.rel (%p262) target = $region52
        $region51: #{tpu_custom_call.1} parent=39 // pred_region
          %266 = dma.done [#allocation6], 32
        $region52: #{tpu_custom_call.1} parent=39 // pred_fallthru
          _
        // Predicated region
        $region53: #{tpu_custom_call.1} parent=39 // pred_check
          %p267 = pneg %p108
        $region54: #{tpu_custom_call.1} parent=39 // pred_check_branch
          %269 = sbr.rel (%p267) target = $region56
        $region55: #{tpu_custom_call.1} parent=39 // pred_region
          %271 = dma.done [#allocation9], 4096
        $region56: #{tpu_custom_call.1} parent=39 // pred_fallthru
          _
        %s272 = sand.u32 %s32, 1
        %s273 = scalar_lea.sflag [#allocation3], %s272
        %s274 = sand.u32 %s32, 1
        %s275 = smul.addr %s274, 256
        %s276 = scalar_lea.vmem [#allocation2], %s275
        %p277 = pneg %p45
        %p278 = pneg %p42
        %p279 = pneg %p66
        %p280 = pneg %p63
        %p281 = pneg %p87
        %p282 = pneg %p84
        %p283 = pneg %p108
        %p284 = pneg %p105
        %p285 = pneg %p129
        %p286 = pneg %p126
        %p287 = pneg %p155
        %p288 = pneg %p152
        %s289 = sand.u32 %s142, 1
        %s290 = scalar_lea.sflag [#allocation4], %s289
        %s291 = sand.u32 %s142, 1
        %s292 = smul.addr %s291, 256
        %s293 = scalar_lea.vmem [#allocation10], %s292
        %s294 = smul.u32 32, %s24
        %s295 = smul.u32 32, %s24
        %v296 = vld [vmem:[#allocation5] sm:$0xff]
        %v297 = vld [vmem:[#allocation5 + $0x8] sm:$0xff]
        %v298 = vld [vmem:[#allocation5 + $0x10] sm:$0xff]
        %v299 = vld [vmem:[#allocation5 + $0x18] sm:$0xff]
        %v300 = vld [vmem:[#allocation5 + $0x20] sm:$0xff]
        %v301 = vld [vmem:[#allocation5 + $0x28] sm:$0xff]
        %v302 = vld [vmem:[#allocation5 + $0x30] sm:$0xff]
        %v303 = vld [vmem:[#allocation5 + $0x38] sm:$0xff]
        %v304 = vld [vmem:[#allocation5 + $0x40] sm:$0xff]
        %v305 = vld [vmem:[#allocation5 + $0x48] sm:$0xff]
        %v306 = vld [vmem:[#allocation5 + $0x50] sm:$0xff]
        %v307 = vld [vmem:[#allocation5 + $0x58] sm:$0xff]
        %v308 = vld [vmem:[#allocation5 + $0x60] sm:$0xff]
        %v309 = vld [vmem:[#allocation5 + $0x68] sm:$0xff]
        %v310 = vld [vmem:[#allocation5 + $0x70] sm:$0xff]
        %v311 = vld [vmem:[#allocation5 + $0x78] sm:$0xff]
        %v312 = vld [vmem:[#allocation5 + $0x80] sm:$0xff]
        %v313 = vld [vmem:[#allocation5 + $0x88] sm:$0xff]
        %v314 = vld [vmem:[#allocation5 + $0x90] sm:$0xff]
        %v315 = vld [vmem:[#allocation5 + $0x98] sm:$0xff]
        %v316 = vld [vmem:[#allocation5 + $0xa0] sm:$0xff]
        %v317 = vld [vmem:[#allocation5 + $0xa8] sm:$0xff]
        %v318 = vld [vmem:[#allocation5 + $0xb0] sm:$0xff]
        %v319 = vld [vmem:[#allocation5 + $0xb8] sm:$0xff]
        %v320 = vld [vmem:[#allocation5 + $0xc0] sm:$0xff]
        %v321 = vld [vmem:[#allocation5 + $0xc8] sm:$0xff]
        %v322 = vld [vmem:[#allocation5 + $0xd0] sm:$0xff]
        %v323 = vld [vmem:[#allocation5 + $0xd8] sm:$0xff]
        %v324 = vld [vmem:[#allocation5 + $0xe0] sm:$0xff]
        %v325 = vld [vmem:[#allocation5 + $0xe8] sm:$0xff]
        %v326 = vld [vmem:[#allocation5 + $0xf0] sm:$0xff]
        %v327 = vld [vmem:[#allocation5 + $0xf8] sm:$0xff]
        %v328 = vld [vmem:[#allocation7] sm:$0x3]
        %v329 = vunpack.c.l.bf16 %v328
        %v330 = vld [vmem:[#allocation8] sm:$0xff]
        %v331 = vld [vmem:[#allocation8 + $0x8] sm:$0xff]
        %v332 = vld [vmem:[#allocation8 + $0x10] sm:$0xff]
        %v333 = vld [vmem:[#allocation8 + $0x18] sm:$0xff]
        %v334 = vld [vmem:[#allocation8 + $0x20] sm:$0xff]
        %v335 = vld [vmem:[#allocation8 + $0x28] sm:$0xff]
        %v336 = vld [vmem:[#allocation8 + $0x30] sm:$0xff]
        %v337 = vld [vmem:[#allocation8 + $0x38] sm:$0xff]
        %v338 = vld [vmem:[#allocation8 + $0x40] sm:$0xff]
        %v339 = vld [vmem:[#allocation8 + $0x48] sm:$0xff]
        %v340 = vld [vmem:[#allocation8 + $0x50] sm:$0xff]
        %v341 = vld [vmem:[#allocation8 + $0x58] sm:$0xff]
        %v342 = vld [vmem:[#allocation8 + $0x60] sm:$0xff]
        %v343 = vld [vmem:[#allocation8 + $0x68] sm:$0xff]
        %v344 = vld [vmem:[#allocation8 + $0x70] sm:$0xff]
        %v345 = vld [vmem:[#allocation8 + $0x78] sm:$0xff]
        %v346 = vld [vmem:[#allocation8 + $0x80] sm:$0xff]
        %v347 = vld [vmem:[#allocation8 + $0x88] sm:$0xff]
        %v348 = vld [vmem:[#allocation8 + $0x90] sm:$0xff]
        %v349 = vld [vmem:[#allocation8 + $0x98] sm:$0xff]
        %v350 = vld [vmem:[#allocation8 + $0xa0] sm:$0xff]
        %v351 = vld [vmem:[#allocation8 + $0xa8] sm:$0xff]
        %v352 = vld [vmem:[#allocation8 + $0xb0] sm:$0xff]
        %v353 = vld [vmem:[#allocation8 + $0xb8] sm:$0xff]
        %v354 = vld [vmem:[#allocation8 + $0xc0] sm:$0xff]
        %v355 = vld [vmem:[#allocation8 + $0xc8] sm:$0xff]
        %v356 = vld [vmem:[#allocation8 + $0xd0] sm:$0xff]
        %v357 = vld [vmem:[#allocation8 + $0xd8] sm:$0xff]
        %v358 = vld [vmem:[#allocation8 + $0xe0] sm:$0xff]
        %v359 = vld [vmem:[#allocation8 + $0xe8] sm:$0xff]
        %v360 = vld [vmem:[#allocation8 + $0xf0] sm:$0xff]
        %v361 = vld [vmem:[#allocation8 + $0xf8] sm:$0xff]
        %v362 = vld [vmem:[%s4] sm:$0x3]
        %v363 = vunpack.c.l.bf16 %v362
        %s364 = smul.u32 0, 2
        %s365 = smul.addr %s364, 4
        %s366 = scalar_lea.vmem %s251, %s365 [#allocation2]
        %v367 = vld [vmem:[%s366] sm:$0xff]
        %v368 = vld [vmem:[%s366 + $0x8] sm:$0xff]
        %v369 = vld [vmem:[%s366 + $0x10] sm:$0xff]
        %v370 = vld [vmem:[%s366 + $0x18] sm:$0xff]
        %v371 = vld [vmem:[%s366 + $0x20] sm:$0xff]
        %v372 = vld [vmem:[%s366 + $0x28] sm:$0xff]
        %v373 = vld [vmem:[%s366 + $0x30] sm:$0xff]
        %v374 = vld [vmem:[%s366 + $0x38] sm:$0xff]
        %v375 = vld [vmem:[%s366 + $0x40] sm:$0xff]
        %v376 = vld [vmem:[%s366 + $0x48] sm:$0xff]
        %v377 = vld [vmem:[%s366 + $0x50] sm:$0xff]
        %v378 = vld [vmem:[%s366 + $0x58] sm:$0xff]
        %v379 = vld [vmem:[%s366 + $0x60] sm:$0xff]
        %v380 = vld [vmem:[%s366 + $0x68] sm:$0xff]
        %v381 = vld [vmem:[%s366 + $0x70] sm:$0xff]
        %v382 = vld [vmem:[%s366 + $0x78] sm:$0xff]
        %v384 = vperm.slane %v329, 0
        %v385 = vperm.slane %v329, 2
        %v388 = vperm.slane %v384, 0
        %v389 = vperm.slane %v385, 0
        %v406 = vunpack.c.l.b16 %v367
        %v407 = vunpack.c.h.b16 %v367
        %v408 = vunpack.c.l.b16 %v368
        %v409 = vunpack.c.h.b16 %v368
        %v410 = vunpack.c.l.b16 %v369
        %v411 = vunpack.c.h.b16 %v369
        %v412 = vunpack.c.l.b16 %v370
        %v413 = vunpack.c.h.b16 %v370
        %v414 = vunpack.c.l.b16 %v371
        %v415 = vunpack.c.h.b16 %v371
        %v416 = vunpack.c.l.b16 %v372
        %v417 = vunpack.c.h.b16 %v372
        %v418 = vunpack.c.l.b16 %v373
        %v419 = vunpack.c.h.b16 %v373
        %v420 = vunpack.c.l.b16 %v374
        %v421 = vunpack.c.h.b16 %v374
        %v422 = vunpack.c.l.b16 %v375
        %v423 = vunpack.c.h.b16 %v375
        %v424 = vunpack.c.l.b16 %v376
        %v425 = vunpack.c.h.b16 %v376
        %v426 = vunpack.c.l.b16 %v377
        %v427 = vunpack.c.h.b16 %v377
        %v428 = vunpack.c.l.b16 %v378
        %v429 = vunpack.c.h.b16 %v378
        %v430 = vunpack.c.l.b16 %v379
        %v431 = vunpack.c.h.b16 %v379
        %v432 = vunpack.c.l.b16 %v380
        %v433 = vunpack.c.h.b16 %v380
        %v434 = vunpack.c.l.b16 %v381
        %v435 = vunpack.c.h.b16 %v381
        %v436 = vunpack.c.l.b16 %v382
        %v437 = vunpack.c.h.b16 %v382
        %v438 = vpack.c.b16 %v408, %v406
        %v439 = vpack.c.b16 %v409, %v407
        %v440 = vpack.c.b16 %v412, %v410
        %v441 = vpack.c.b16 %v413, %v411
        %v442 = vpack.c.b16 %v416, %v414
        %v443 = vpack.c.b16 %v417, %v415
        %v444 = vpack.c.b16 %v420, %v418
        %v445 = vpack.c.b16 %v421, %v419
        %v446 = vpack.c.b16 %v424, %v422
        %v447 = vpack.c.b16 %v425, %v423
        %v448 = vpack.c.b16 %v428, %v426
        %v449 = vpack.c.b16 %v429, %v427
        %v450 = vpack.c.b16 %v432, %v430
        %v451 = vpack.c.b16 %v433, %v431
        %v452 = vpack.c.b16 %v436, %v434
        %v453 = vpack.c.b16 %v437, %v435
        %v502 = vunpack.c.l.b16 %v296
        %v503 = vunpack.c.h.b16 %v296
        %v504 = vunpack.c.l.b16 %v297
        %v505 = vunpack.c.h.b16 %v297
        %v506 = vunpack.c.l.b16 %v298
        %v507 = vunpack.c.h.b16 %v298
        %v508 = vunpack.c.l.b16 %v299
        %v509 = vunpack.c.h.b16 %v299
        %v510 = vunpack.c.l.b16 %v300
        %v511 = vunpack.c.h.b16 %v300
        %v512 = vunpack.c.l.b16 %v301
        %v513 = vunpack.c.h.b16 %v301
        %v514 = vunpack.c.l.b16 %v302
        %v515 = vunpack.c.h.b16 %v302
        %v516 = vunpack.c.l.b16 %v303
        %v517 = vunpack.c.h.b16 %v303
        %v518 = vunpack.c.l.b16 %v304
        %v519 = vunpack.c.h.b16 %v304
        %v520 = vunpack.c.l.b16 %v305
        %v521 = vunpack.c.h.b16 %v305
        %v522 = vunpack.c.l.b16 %v306
        %v523 = vunpack.c.h.b16 %v306
        %v524 = vunpack.c.l.b16 %v307
        %v525 = vunpack.c.h.b16 %v307
        %v526 = vunpack.c.l.b16 %v308
        %v527 = vunpack.c.h.b16 %v308
        %v528 = vunpack.c.l.b16 %v309
        %v529 = vunpack.c.h.b16 %v309
        %v530 = vunpack.c.l.b16 %v310
        %v531 = vunpack.c.h.b16 %v310
        %v532 = vunpack.c.l.b16 %v311
        %v533 = vunpack.c.h.b16 %v311
        %v534 = vunpack.c.l.b16 %v312
        %v535 = vunpack.c.h.b16 %v312
        %v536 = vunpack.c.l.b16 %v313
        %v537 = vunpack.c.h.b16 %v313
        %v538 = vunpack.c.l.b16 %v314
        %v539 = vunpack.c.h.b16 %v314
        %v540 = vunpack.c.l.b16 %v315
        %v541 = vunpack.c.h.b16 %v315
        %v542 = vunpack.c.l.b16 %v316
        %v543 = vunpack.c.h.b16 %v316
        %v544 = vunpack.c.l.b16 %v317
        %v545 = vunpack.c.h.b16 %v317
        %v546 = vunpack.c.l.b16 %v318
        %v547 = vunpack.c.h.b16 %v318
        %v548 = vunpack.c.l.b16 %v319
        %v549 = vunpack.c.h.b16 %v319
        %v550 = vunpack.c.l.b16 %v320
        %v551 = vunpack.c.h.b16 %v320
        %v552 = vunpack.c.l.b16 %v321
        %v553 = vunpack.c.h.b16 %v321
        %v554 = vunpack.c.l.b16 %v322
        %v555 = vunpack.c.h.b16 %v322
        %v556 = vunpack.c.l.b16 %v323
        %v557 = vunpack.c.h.b16 %v323
        %v558 = vunpack.c.l.b16 %v324
        %v559 = vunpack.c.h.b16 %v324
        %v560 = vunpack.c.l.b16 %v325
        %v561 = vunpack.c.h.b16 %v325
        %v562 = vunpack.c.l.b16 %v326
        %v563 = vunpack.c.h.b16 %v326
        %v564 = vunpack.c.l.b16 %v327
        %v565 = vunpack.c.h.b16 %v327
        %v566 = vpack.c.b16 %v504, %v502
        %v567 = vpack.c.b16 %v505, %v503
        %v568 = vpack.c.b16 %v508, %v506
        %v569 = vpack.c.b16 %v509, %v507
        %v570 = vpack.c.b16 %v512, %v510
        %v571 = vpack.c.b16 %v513, %v511
        %v572 = vpack.c.b16 %v516, %v514
        %v573 = vpack.c.b16 %v517, %v515
        %v574 = vpack.c.b16 %v520, %v518
        %v575 = vpack.c.b16 %v521, %v519
        %v576 = vpack.c.b16 %v524, %v522
        %v577 = vpack.c.b16 %v525, %v523
        %v578 = vpack.c.b16 %v528, %v526
        %v579 = vpack.c.b16 %v529, %v527
        %v580 = vpack.c.b16 %v532, %v530
        %v581 = vpack.c.b16 %v533, %v531
        %v582 = vpack.c.b16 %v536, %v534
        %v583 = vpack.c.b16 %v537, %v535
        %v584 = vpack.c.b16 %v540, %v538
        %v585 = vpack.c.b16 %v541, %v539
        %v586 = vpack.c.b16 %v544, %v542
        %v587 = vpack.c.b16 %v545, %v543
        %v588 = vpack.c.b16 %v548, %v546
        %v589 = vpack.c.b16 %v549, %v547
        %v590 = vpack.c.b16 %v552, %v550
        %v591 = vpack.c.b16 %v553, %v551
        %v592 = vpack.c.b16 %v556, %v554
        %v593 = vpack.c.b16 %v557, %v555
        %v594 = vpack.c.b16 %v560, %v558
        %v595 = vpack.c.b16 %v561, %v559
        %v596 = vpack.c.b16 %v564, %v562
        %v597 = vpack.c.b16 %v565, %v563
        %630 = vmatpush.bf16.msra.mxu0 %v580
        %631 = vmatpush.bf16.msra.mxu0 %v578
        %632 = vmatpush.bf16.msra.mxu0 %v576
        %633 = vmatpush.bf16.msra.mxu0 %v574
        %634 = vmatpush.bf16.msra.mxu0 %v572
        %635 = vmatpush.bf16.msra.mxu0 %v570
        %636 = vmatpush.bf16.msra.mxu0 %v568
        %637 = vmatpush.bf16.msra.mxu0 %v566
        %638 = vmatmul.bf16.gmra.mxu0 %v438
        %v639 = vpop.f32.mrf.mxu0
        %v640 = vadd.f32 %v388, %v639
        %v641 = vpop.f32.mrf.mxu0
        %v642 = vadd.f32 %v388, %v641
        %643 = vmatmul.bf16.gmra.mxu0 %v440
        %v644 = vpop.f32.mrf.mxu0
        %v645 = vadd.f32 %v388, %v644
        %v646 = vpop.f32.mrf.mxu0
        %v647 = vadd.f32 %v388, %v646
        %648 = vmatmul.bf16.gmra.mxu0 %v442
        %v649 = vpop.f32.mrf.mxu0
        %v650 = vadd.f32 %v388, %v649
        %v651 = vpop.f32.mrf.mxu0
        %v652 = vadd.f32 %v388, %v651
        %653 = vmatmul.bf16.gmra.mxu0 %v444
        %v654 = vpop.f32.mrf.mxu0
        %v655 = vadd.f32 %v388, %v654
        %v656 = vpop.f32.mrf.mxu0
        %v657 = vadd.f32 %v388, %v656
        %658 = vmatmul.bf16.gmra.mxu0 %v446
        %v659 = vpop.f32.mrf.mxu0
        %v660 = vadd.f32 %v388, %v659
        %v661 = vpop.f32.mrf.mxu0
        %v662 = vadd.f32 %v388, %v661
        %663 = vmatmul.bf16.gmra.mxu0 %v448
        %v664 = vpop.f32.mrf.mxu0
        %v665 = vadd.f32 %v388, %v664
        %v666 = vpop.f32.mrf.mxu0
        %v667 = vadd.f32 %v388, %v666
        %668 = vmatmul.bf16.gmra.mxu0 %v450
        %v669 = vpop.f32.mrf.mxu0
        %v670 = vadd.f32 %v388, %v669
        %v671 = vpop.f32.mrf.mxu0
        %v672 = vadd.f32 %v388, %v671
        %673 = vmatmul.bf16.gmra.mxu0 %v452
        %v674 = vpop.f32.mrf.mxu0
        %v675 = vadd.f32 %v388, %v674
        %v676 = vpop.f32.mrf.mxu0
        %v677 = vadd.f32 %v388, %v676
        %678 = vdwg.mxu0
        %679 = vmatpush.bf16.msra.mxu0 %v596
        %680 = vmatpush.bf16.msra.mxu0 %v594
        %681 = vmatpush.bf16.msra.mxu0 %v592
        %682 = vmatpush.bf16.msra.mxu0 %v590
        %683 = vmatpush.bf16.msra.mxu0 %v588
        %684 = vmatpush.bf16.msra.mxu0 %v586
        %685 = vmatpush.bf16.msra.mxu0 %v584
        %686 = vmatpush.bf16.msra.mxu0 %v582
        %687 = vmatmul.bf16.gmra.mxu0 %v439
        %v688 = vpop.f32.mrf.mxu0
        %v689 = vadd.f32 %v640, %v688
        %v690 = vpop.f32.mrf.mxu0
        %v691 = vadd.f32 %v642, %v690
        %692 = vmatmul.bf16.gmra.mxu0 %v441
        %v693 = vpop.f32.mrf.mxu0
        %v694 = vadd.f32 %v645, %v693
        %v695 = vpop.f32.mrf.mxu0
        %v696 = vadd.f32 %v647, %v695
        %697 = vmatmul.bf16.gmra.mxu0 %v443
        %v698 = vpop.f32.mrf.mxu0
        %v699 = vadd.f32 %v650, %v698
        %v700 = vpop.f32.mrf.mxu0
        %v701 = vadd.f32 %v652, %v700
        %702 = vmatmul.bf16.gmra.mxu0 %v445
        %v703 = vpop.f32.mrf.mxu0
        %v704 = vadd.f32 %v655, %v703
        %v705 = vpop.f32.mrf.mxu0
        %v706 = vadd.f32 %v657, %v705
        %707 = vmatmul.bf16.gmra.mxu0 %v447
        %v708 = vpop.f32.mrf.mxu0
        %v709 = vadd.f32 %v660, %v708
        %v710 = vpop.f32.mrf.mxu0
        %v711 = vadd.f32 %v662, %v710
        %712 = vmatmul.bf16.gmra.mxu0 %v449
        %v713 = vpop.f32.mrf.mxu0
        %v714 = vadd.f32 %v665, %v713
        %v715 = vpop.f32.mrf.mxu0
        %v716 = vadd.f32 %v667, %v715
        %717 = vmatmul.bf16.gmra.mxu0 %v451
        %v718 = vpop.f32.mrf.mxu0
        %v719 = vadd.f32 %v670, %v718
        %v720 = vpop.f32.mrf.mxu0
        %v721 = vadd.f32 %v672, %v720
        %722 = vmatmul.bf16.gmra.mxu0 %v453
        %v723 = vpop.f32.mrf.mxu0
        %v724 = vadd.f32 %v675, %v723
        %v725 = vpop.f32.mrf.mxu0
        %v726 = vadd.f32 %v677, %v725
        %727 = vdwg.mxu0
        %728 = vmatpush.bf16.msra.mxu0 %v581
        %729 = vmatpush.bf16.msra.mxu0 %v579
        %730 = vmatpush.bf16.msra.mxu0 %v577
        %731 = vmatpush.bf16.msra.mxu0 %v575
        %732 = vmatpush.bf16.msra.mxu0 %v573
        %733 = vmatpush.bf16.msra.mxu0 %v571
        %734 = vmatpush.bf16.msra.mxu0 %v569
        %735 = vmatpush.bf16.msra.mxu0 %v567
        %736 = vmatmul.bf16.gmra.mxu0 %v438
        %v737 = vpop.f32.mrf.mxu0
        %v738 = vadd.f32 %v389, %v737
        %v739 = vpop.f32.mrf.mxu0
        %v740 = vadd.f32 %v389, %v739
        %741 = vmatmul.bf16.gmra.mxu0 %v440
        %v742 = vpop.f32.mrf.mxu0
        %v743 = vadd.f32 %v389, %v742
        %v744 = vpop.f32.mrf.mxu0
        %v745 = vadd.f32 %v389, %v744
        %746 = vmatmul.bf16.gmra.mxu0 %v442
        %v747 = vpop.f32.mrf.mxu0
        %v748 = vadd.f32 %v389, %v747
        %v749 = vpop.f32.mrf.mxu0
        %v750 = vadd.f32 %v389, %v749
        %751 = vmatmul.bf16.gmra.mxu0 %v444
        %v752 = vpop.f32.mrf.mxu0
        %v753 = vadd.f32 %v389, %v752
        %v754 = vpop.f32.mrf.mxu0
        %v755 = vadd.f32 %v389, %v754
        %756 = vmatmul.bf16.gmra.mxu0 %v446
        %v757 = vpop.f32.mrf.mxu0
        %v758 = vadd.f32 %v389, %v757
        %v759 = vpop.f32.mrf.mxu0
        %v760 = vadd.f32 %v389, %v759
        %761 = vmatmul.bf16.gmra.mxu0 %v448
        %v762 = vpop.f32.mrf.mxu0
        %v763 = vadd.f32 %v389, %v762
        %v764 = vpop.f32.mrf.mxu0
        %v765 = vadd.f32 %v389, %v764
        %766 = vmatmul.bf16.gmra.mxu0 %v450
        %v767 = vpop.f32.mrf.mxu0
        %v768 = vadd.f32 %v389, %v767
        %v769 = vpop.f32.mrf.mxu0
        %v770 = vadd.f32 %v389, %v769
        %771 = vmatmul.bf16.gmra.mxu0 %v452
        %v772 = vpop.f32.mrf.mxu0
        %v773 = vadd.f32 %v389, %v772
        %v774 = vpop.f32.mrf.mxu0
        %v775 = vadd.f32 %v389, %v774
        %776 = vdwg.mxu0
        %777 = vmatpush.bf16.msra.mxu0 %v597
        %778 = vmatpush.bf16.msra.mxu0 %v595
        %779 = vmatpush.bf16.msra.mxu0 %v593
        %780 = vmatpush.bf16.msra.mxu0 %v591
        %781 = vmatpush.bf16.msra.mxu0 %v589
        %782 = vmatpush.bf16.msra.mxu0 %v587
        %783 = vmatpush.bf16.msra.mxu0 %v585
        %784 = vmatpush.bf16.msra.mxu0 %v583
        %785 = vmatmul.bf16.gmra.mxu0 %v439
        %v786 = vpop.f32.mrf.mxu0
        %v787 = vadd.f32 %v738, %v786
        %v788 = vpop.f32.mrf.mxu0
        %v789 = vadd.f32 %v740, %v788
        %790 = vmatmul.bf16.gmra.mxu0 %v441
        %v791 = vpop.f32.mrf.mxu0
        %v792 = vadd.f32 %v743, %v791
        %v793 = vpop.f32.mrf.mxu0
        %v794 = vadd.f32 %v745, %v793
        %795 = vmatmul.bf16.gmra.mxu0 %v443
        %v796 = vpop.f32.mrf.mxu0
        %v797 = vadd.f32 %v748, %v796
        %v798 = vpop.f32.mrf.mxu0
        %v799 = vadd.f32 %v750, %v798
        %800 = vmatmul.bf16.gmra.mxu0 %v445
        %v801 = vpop.f32.mrf.mxu0
        %v802 = vadd.f32 %v753, %v801
        %v803 = vpop.f32.mrf.mxu0
        %v804 = vadd.f32 %v755, %v803
        %805 = vmatmul.bf16.gmra.mxu0 %v447
        %v806 = vpop.f32.mrf.mxu0
        %v807 = vadd.f32 %v758, %v806
        %v808 = vpop.f32.mrf.mxu0
        %v809 = vadd.f32 %v760, %v808
        %810 = vmatmul.bf16.gmra.mxu0 %v449
        %v811 = vpop.f32.mrf.mxu0
        %v812 = vadd.f32 %v763, %v811
        %v813 = vpop.f32.mrf.mxu0
        %v814 = vadd.f32 %v765, %v813
        %815 = vmatmul.bf16.gmra.mxu0 %v451
        %v816 = vpop.f32.mrf.mxu0
        %v817 = vadd.f32 %v768, %v816
        %v818 = vpop.f32.mrf.mxu0
        %v819 = vadd.f32 %v770, %v818
        %820 = vmatmul.bf16.gmra.mxu0 %v453
        %v821 = vpop.f32.mrf.mxu0
        %v822 = vadd.f32 %v773, %v821
        %v823 = vpop.f32.mrf.mxu0
        %v824 = vadd.f32 %v775, %v823
        %825 = vdwg.mxu0
        %v826 = vxor.u32 %v689, 2147483648
        %v827 = vxor.u32 %v787, 2147483648
        %v828 = vxor.u32 %v691, 2147483648
        %v829 = vxor.u32 %v789, 2147483648
        %v830 = vxor.u32 %v694, 2147483648
        %v831 = vxor.u32 %v792, 2147483648
        %v832 = vxor.u32 %v696, 2147483648
        %v833 = vxor.u32 %v794, 2147483648
        %v834 = vxor.u32 %v699, 2147483648
        %v835 = vxor.u32 %v797, 2147483648
        %v836 = vxor.u32 %v701, 2147483648
        %v837 = vxor.u32 %v799, 2147483648
        %v838 = vxor.u32 %v704, 2147483648
        %v839 = vxor.u32 %v802, 2147483648
        %v840 = vxor.u32 %v706, 2147483648
        %v841 = vxor.u32 %v804, 2147483648
        %v842 = vxor.u32 %v709, 2147483648
        %v843 = vxor.u32 %v807, 2147483648
        %v844 = vxor.u32 %v711, 2147483648
        %v845 = vxor.u32 %v809, 2147483648
        %v846 = vxor.u32 %v714, 2147483648
        %v847 = vxor.u32 %v812, 2147483648
        %v848 = vxor.u32 %v716, 2147483648
        %v849 = vxor.u32 %v814, 2147483648
        %v850 = vxor.u32 %v719, 2147483648
        %v851 = vxor.u32 %v817, 2147483648
        %v852 = vxor.u32 %v721, 2147483648
        %v853 = vxor.u32 %v819, 2147483648
        %v854 = vxor.u32 %v724, 2147483648
        %v855 = vxor.u32 %v822, 2147483648
        %v856 = vxor.u32 %v726, 2147483648
        %v857 = vxor.u32 %v824, 2147483648
        %v858 = vmul.f32 %v826, 1.442695
        %v859 = vpow.pop %v858
        %v860 = vmul.f32 %v827, 1.442695
        %v861 = vpow.pop %v860
        %v862 = vmul.f32 %v828, 1.442695
        %v863 = vpow.pop %v862
        %v864 = vmul.f32 %v829, 1.442695
        %v865 = vpow.pop %v864
        %v866 = vmul.f32 %v830, 1.442695
        %v867 = vpow.pop %v866
        %v868 = vmul.f32 %v831, 1.442695
        %v869 = vpow.pop %v868
        %v870 = vmul.f32 %v832, 1.442695
        %v871 = vpow.pop %v870
        %v872 = vmul.f32 %v833, 1.442695
        %v873 = vpow.pop %v872
        %v874 = vmul.f32 %v834, 1.442695
        %v875 = vpow.pop %v874
        %v876 = vmul.f32 %v835, 1.442695
        %v877 = vpow.pop %v876
        %v878 = vmul.f32 %v836, 1.442695
        %v879 = vpow.pop %v878
        %v880 = vmul.f32 %v837, 1.442695
        %v881 = vpow.pop %v880
        %v882 = vmul.f32 %v838, 1.442695
        %v883 = vpow.pop %v882
        %v884 = vmul.f32 %v839, 1.442695
        %v885 = vpow.pop %v884
        %v886 = vmul.f32 %v840, 1.442695
        %v887 = vpow.pop %v886
        %v888 = vmul.f32 %v841, 1.442695
        %v889 = vpow.pop %v888
        %v890 = vmul.f32 %v842, 1.442695
        %v891 = vpow.pop %v890
        %v892 = vmul.f32 %v843, 1.442695
        %v893 = vpow.pop %v892
        %v894 = vmul.f32 %v844, 1.442695
        %v895 = vpow.pop %v894
        %v896 = vmul.f32 %v845, 1.442695
        %v897 = vpow.pop %v896
        %v898 = vmul.f32 %v846, 1.442695
        %v899 = vpow.pop %v898
        %v900 = vmul.f32 %v847, 1.442695
        %v901 = vpow.pop %v900
        %v902 = vmul.f32 %v848, 1.442695
        %v903 = vpow.pop %v902
        %v904 = vmul.f32 %v849, 1.442695
        %v905 = vpow.pop %v904
        %v906 = vmul.f32 %v850, 1.442695
        %v907 = vpow.pop %v906
        %v908 = vmul.f32 %v851, 1.442695
        %v909 = vpow.pop %v908
        %v910 = vmul.f32 %v852, 1.442695
        %v911 = vpow.pop %v910
        %v912 = vmul.f32 %v853, 1.442695
        %v913 = vpow.pop %v912
        %v914 = vmul.f32 %v854, 1.442695
        %v915 = vpow.pop %v914
        %v916 = vmul.f32 %v855, 1.442695
        %v917 = vpow.pop %v916
        %v918 = vmul.f32 %v856, 1.442695
        %v919 = vpow.pop %v918
        %v920 = vmul.f32 %v857, 1.442695
        %v921 = vpow.pop %v920
        %v922 = vadd.f32 %v859, 1.0
        %v923 = vadd.f32 %v861, 1.0
        %v924 = vadd.f32 %v863, 1.0
        %v925 = vadd.f32 %v865, 1.0
        %v926 = vadd.f32 %v867, 1.0
        %v927 = vadd.f32 %v869, 1.0
        %v928 = vadd.f32 %v871, 1.0
        %v929 = vadd.f32 %v873, 1.0
        %v930 = vadd.f32 %v875, 1.0
        %v931 = vadd.f32 %v877, 1.0
        %v932 = vadd.f32 %v879, 1.0
        %v933 = vadd.f32 %v881, 1.0
        %v934 = vadd.f32 %v883, 1.0
        %v935 = vadd.f32 %v885, 1.0
        %v936 = vadd.f32 %v887, 1.0
        %v937 = vadd.f32 %v889, 1.0
        %v938 = vadd.f32 %v891, 1.0
        %v939 = vadd.f32 %v893, 1.0
        %v940 = vadd.f32 %v895, 1.0
        %v941 = vadd.f32 %v897, 1.0
        %v942 = vadd.f32 %v899, 1.0
        %v943 = vadd.f32 %v901, 1.0
        %v944 = vadd.f32 %v903, 1.0
        %v945 = vadd.f32 %v905, 1.0
        %v946 = vadd.f32 %v907, 1.0
        %v947 = vadd.f32 %v909, 1.0
        %v948 = vadd.f32 %v911, 1.0
        %v949 = vadd.f32 %v913, 1.0
        %v950 = vadd.f32 %v915, 1.0
        %v951 = vadd.f32 %v917, 1.0
        %v952 = vadd.f32 %v919, 1.0
        %v953 = vadd.f32 %v921, 1.0
        %v954 = vrcp.pop %v922
        %v955 = vmul.f32 %v922, %v954
        %v956 = vsub.f32 1.0, %v955
        %v957 = vmul.f32 %v954, %v956
        %v958 = vadd.f32 %v954, %v957
        %vm959 = vweird.f32 %v922
        %vm960 = vweird.f32 %v954
        %vm961 = vmor %vm959, %vm960
        %v962 = vsel %vm961, %v954, %v958
        %v963 = vand.u32 2147483647, %v922
        %vm964 = vcmp.eq.f32.partialorder %v963, 8.507059e+37
        %v965 = vand.u32 %v922, 2147483648
        %v966 = vor.u32 1.1754944e-38, %v965
        %v967 = vsel %vm964, %v966, %v962
        %v968 = vmul.f32 1.0, %v967
        %v969 = vrcp.pop %v923
        %v970 = vmul.f32 %v923, %v969
        %v971 = vsub.f32 1.0, %v970
        %v972 = vmul.f32 %v969, %v971
        %v973 = vadd.f32 %v969, %v972
        %vm974 = vweird.f32 %v923
        %vm975 = vweird.f32 %v969
        %vm976 = vmor %vm974, %vm975
        %v977 = vsel %vm976, %v969, %v973
        %v978 = vand.u32 2147483647, %v923
        %vm979 = vcmp.eq.f32.partialorder %v978, 8.507059e+37
        %v980 = vand.u32 %v923, 2147483648
        %v981 = vor.u32 1.1754944e-38, %v980
        %v982 = vsel %vm979, %v981, %v977
        %v983 = vmul.f32 1.0, %v982
        %v984 = vrcp.pop %v924
        %v985 = vmul.f32 %v924, %v984
        %v986 = vsub.f32 1.0, %v985
        %v987 = vmul.f32 %v984, %v986
        %v988 = vadd.f32 %v984, %v987
        %vm989 = vweird.f32 %v924
        %vm990 = vweird.f32 %v984
        %vm991 = vmor %vm989, %vm990
        %v992 = vsel %vm991, %v984, %v988
        %v993 = vand.u32 2147483647, %v924
        %vm994 = vcmp.eq.f32.partialorder %v993, 8.507059e+37
        %v995 = vand.u32 %v924, 2147483648
        %v996 = vor.u32 1.1754944e-38, %v995
        %v997 = vsel %vm994, %v996, %v992
        %v998 = vmul.f32 1.0, %v997
        %v999 = vrcp.pop %v925
        %v1000 = vmul.f32 %v925, %v999
        %v1001 = vsub.f32 1.0, %v1000
        %v1002 = vmul.f32 %v999, %v1001
        %v1003 = vadd.f32 %v999, %v1002
        %vm1004 = vweird.f32 %v925
        %vm1005 = vweird.f32 %v999
        %vm1006 = vmor %vm1004, %vm1005
        %v1007 = vsel %vm1006, %v999, %v1003
        %v1008 = vand.u32 2147483647, %v925
        %vm1009 = vcmp.eq.f32.partialorder %v1008, 8.507059e+37
        %v1010 = vand.u32 %v925, 2147483648
        %v1011 = vor.u32 1.1754944e-38, %v1010
        %v1012 = vsel %vm1009, %v1011, %v1007
        %v1013 = vmul.f32 1.0, %v1012
        %v1014 = vrcp.pop %v926
        %v1015 = vmul.f32 %v926, %v1014
        %v1016 = vsub.f32 1.0, %v1015
        %v1017 = vmul.f32 %v1014, %v1016
        %v1018 = vadd.f32 %v1014, %v1017
        %vm1019 = vweird.f32 %v926
        %vm1020 = vweird.f32 %v1014
        %vm1021 = vmor %vm1019, %vm1020
        %v1022 = vsel %vm1021, %v1014, %v1018
        %v1023 = vand.u32 2147483647, %v926
        %vm1024 = vcmp.eq.f32.partialorder %v1023, 8.507059e+37
        %v1025 = vand.u32 %v926, 2147483648
        %v1026 = vor.u32 1.1754944e-38, %v1025
        %v1027 = vsel %vm1024, %v1026, %v1022
        %v1028 = vmul.f32 1.0, %v1027
        %v1029 = vrcp.pop %v927
        %v1030 = vmul.f32 %v927, %v1029
        %v1031 = vsub.f32 1.0, %v1030
        %v1032 = vmul.f32 %v1029, %v1031
        %v1033 = vadd.f32 %v1029, %v1032
        %vm1034 = vweird.f32 %v927
        %vm1035 = vweird.f32 %v1029
        %vm1036 = vmor %vm1034, %vm1035
        %v1037 = vsel %vm1036, %v1029, %v1033
        %v1038 = vand.u32 2147483647, %v927
        %vm1039 = vcmp.eq.f32.partialorder %v1038, 8.507059e+37
        %v1040 = vand.u32 %v927, 2147483648
        %v1041 = vor.u32 1.1754944e-38, %v1040
        %v1042 = vsel %vm1039, %v1041, %v1037
        %v1043 = vmul.f32 1.0, %v1042
        %v1044 = vrcp.pop %v928
        %v1045 = vmul.f32 %v928, %v1044
        %v1046 = vsub.f32 1.0, %v1045
        %v1047 = vmul.f32 %v1044, %v1046
        %v1048 = vadd.f32 %v1044, %v1047
        %vm1049 = vweird.f32 %v928
        %vm1050 = vweird.f32 %v1044
        %vm1051 = vmor %vm1049, %vm1050
        %v1052 = vsel %vm1051, %v1044, %v1048
        %v1053 = vand.u32 2147483647, %v928
        %vm1054 = vcmp.eq.f32.partialorder %v1053, 8.507059e+37
        %v1055 = vand.u32 %v928, 2147483648
        %v1056 = vor.u32 1.1754944e-38, %v1055
        %v1057 = vsel %vm1054, %v1056, %v1052
        %v1058 = vmul.f32 1.0, %v1057
        %v1059 = vrcp.pop %v929
        %v1060 = vmul.f32 %v929, %v1059
        %v1061 = vsub.f32 1.0, %v1060
        %v1062 = vmul.f32 %v1059, %v1061
        %v1063 = vadd.f32 %v1059, %v1062
        %vm1064 = vweird.f32 %v929
        %vm1065 = vweird.f32 %v1059
        %vm1066 = vmor %vm1064, %vm1065
        %v1067 = vsel %vm1066, %v1059, %v1063
        %v1068 = vand.u32 2147483647, %v929
        %vm1069 = vcmp.eq.f32.partialorder %v1068, 8.507059e+37
        %v1070 = vand.u32 %v929, 2147483648
        %v1071 = vor.u32 1.1754944e-38, %v1070
        %v1072 = vsel %vm1069, %v1071, %v1067
        %v1073 = vmul.f32 1.0, %v1072
        %v1074 = vrcp.pop %v930
        %v1075 = vmul.f32 %v930, %v1074
        %v1076 = vsub.f32 1.0, %v1075
        %v1077 = vmul.f32 %v1074, %v1076
        %v1078 = vadd.f32 %v1074, %v1077
        %vm1079 = vweird.f32 %v930
        %vm1080 = vweird.f32 %v1074
        %vm1081 = vmor %vm1079, %vm1080
        %v1082 = vsel %vm1081, %v1074, %v1078
        %v1083 = vand.u32 2147483647, %v930
        %vm1084 = vcmp.eq.f32.partialorder %v1083, 8.507059e+37
        %v1085 = vand.u32 %v930, 2147483648
        %v1086 = vor.u32 1.1754944e-38, %v1085
        %v1087 = vsel %vm1084, %v1086, %v1082
        %v1088 = vmul.f32 1.0, %v1087
        %v1089 = vrcp.pop %v931
        %v1090 = vmul.f32 %v931, %v1089
        %v1091 = vsub.f32 1.0, %v1090
        %v1092 = vmul.f32 %v1089, %v1091
        %v1093 = vadd.f32 %v1089, %v1092
        %vm1094 = vweird.f32 %v931
        %vm1095 = vweird.f32 %v1089
        %vm1096 = vmor %vm1094, %vm1095
        %v1097 = vsel %vm1096, %v1089, %v1093
        %v1098 = vand.u32 2147483647, %v931
        %vm1099 = vcmp.eq.f32.partialorder %v1098, 8.507059e+37
        %v1100 = vand.u32 %v931, 2147483648
        %v1101 = vor.u32 1.1754944e-38, %v1100
        %v1102 = vsel %vm1099, %v1101, %v1097
        %v1103 = vmul.f32 1.0, %v1102
        %v1104 = vrcp.pop %v932
        %v1105 = vmul.f32 %v932, %v1104
        %v1106 = vsub.f32 1.0, %v1105
        %v1107 = vmul.f32 %v1104, %v1106
        %v1108 = vadd.f32 %v1104, %v1107
        %vm1109 = vweird.f32 %v932
        %vm1110 = vweird.f32 %v1104
        %vm1111 = vmor %vm1109, %vm1110
        %v1112 = vsel %vm1111, %v1104, %v1108
        %v1113 = vand.u32 2147483647, %v932
        %vm1114 = vcmp.eq.f32.partialorder %v1113, 8.507059e+37
        %v1115 = vand.u32 %v932, 2147483648
        %v1116 = vor.u32 1.1754944e-38, %v1115
        %v1117 = vsel %vm1114, %v1116, %v1112
        %v1118 = vmul.f32 1.0, %v1117
        %v1119 = vrcp.pop %v933
        %v1120 = vmul.f32 %v933, %v1119
        %v1121 = vsub.f32 1.0, %v1120
        %v1122 = vmul.f32 %v1119, %v1121
        %v1123 = vadd.f32 %v1119, %v1122
        %vm1124 = vweird.f32 %v933
        %vm1125 = vweird.f32 %v1119
        %vm1126 = vmor %vm1124, %vm1125
        %v1127 = vsel %vm1126, %v1119, %v1123
        %v1128 = vand.u32 2147483647, %v933
        %vm1129 = vcmp.eq.f32.partialorder %v1128, 8.507059e+37
        %v1130 = vand.u32 %v933, 2147483648
        %v1131 = vor.u32 1.1754944e-38, %v1130
        %v1132 = vsel %vm1129, %v1131, %v1127
        %v1133 = vmul.f32 1.0, %v1132
        %v1134 = vrcp.pop %v934
        %v1135 = vmul.f32 %v934, %v1134
        %v1136 = vsub.f32 1.0, %v1135
        %v1137 = vmul.f32 %v1134, %v1136
        %v1138 = vadd.f32 %v1134, %v1137
        %vm1139 = vweird.f32 %v934
        %vm1140 = vweird.f32 %v1134
        %vm1141 = vmor %vm1139, %vm1140
        %v1142 = vsel %vm1141, %v1134, %v1138
        %v1143 = vand.u32 2147483647, %v934
        %vm1144 = vcmp.eq.f32.partialorder %v1143, 8.507059e+37
        %v1145 = vand.u32 %v934, 2147483648
        %v1146 = vor.u32 1.1754944e-38, %v1145
        %v1147 = vsel %vm1144, %v1146, %v1142
        %v1148 = vmul.f32 1.0, %v1147
        %v1149 = vrcp.pop %v935
        %v1150 = vmul.f32 %v935, %v1149
        %v1151 = vsub.f32 1.0, %v1150
        %v1152 = vmul.f32 %v1149, %v1151
        %v1153 = vadd.f32 %v1149, %v1152
        %vm1154 = vweird.f32 %v935
        %vm1155 = vweird.f32 %v1149
        %vm1156 = vmor %vm1154, %vm1155
        %v1157 = vsel %vm1156, %v1149, %v1153
        %v1158 = vand.u32 2147483647, %v935
        %vm1159 = vcmp.eq.f32.partialorder %v1158, 8.507059e+37
        %v1160 = vand.u32 %v935, 2147483648
        %v1161 = vor.u32 1.1754944e-38, %v1160
        %v1162 = vsel %vm1159, %v1161, %v1157
        %v1163 = vmul.f32 1.0, %v1162
        %v1164 = vrcp.pop %v936
        %v1165 = vmul.f32 %v936, %v1164
        %v1166 = vsub.f32 1.0, %v1165
        %v1167 = vmul.f32 %v1164, %v1166
        %v1168 = vadd.f32 %v1164, %v1167
        %vm1169 = vweird.f32 %v936
        %vm1170 = vweird.f32 %v1164
        %vm1171 = vmor %vm1169, %vm1170
        %v1172 = vsel %vm1171, %v1164, %v1168
        %v1173 = vand.u32 2147483647, %v936
        %vm1174 = vcmp.eq.f32.partialorder %v1173, 8.507059e+37
        %v1175 = vand.u32 %v936, 2147483648
        %v1176 = vor.u32 1.1754944e-38, %v1175
        %v1177 = vsel %vm1174, %v1176, %v1172
        %v1178 = vmul.f32 1.0, %v1177
        %v1179 = vrcp.pop %v937
        %v1180 = vmul.f32 %v937, %v1179
        %v1181 = vsub.f32 1.0, %v1180
        %v1182 = vmul.f32 %v1179, %v1181
        %v1183 = vadd.f32 %v1179, %v1182
        %vm1184 = vweird.f32 %v937
        %vm1185 = vweird.f32 %v1179
        %vm1186 = vmor %vm1184, %vm1185
        %v1187 = vsel %vm1186, %v1179, %v1183
        %v1188 = vand.u32 2147483647, %v937
        %vm1189 = vcmp.eq.f32.partialorder %v1188, 8.507059e+37
        %v1190 = vand.u32 %v937, 2147483648
        %v1191 = vor.u32 1.1754944e-38, %v1190
        %v1192 = vsel %vm1189, %v1191, %v1187
        %v1193 = vmul.f32 1.0, %v1192
        %v1194 = vrcp.pop %v938
        %v1195 = vmul.f32 %v938, %v1194
        %v1196 = vsub.f32 1.0, %v1195
        %v1197 = vmul.f32 %v1194, %v1196
        %v1198 = vadd.f32 %v1194, %v1197
        %vm1199 = vweird.f32 %v938
        %vm1200 = vweird.f32 %v1194
        %vm1201 = vmor %vm1199, %vm1200
        %v1202 = vsel %vm1201, %v1194, %v1198
        %v1203 = vand.u32 2147483647, %v938
        %vm1204 = vcmp.eq.f32.partialorder %v1203, 8.507059e+37
        %v1205 = vand.u32 %v938, 2147483648
        %v1206 = vor.u32 1.1754944e-38, %v1205
        %v1207 = vsel %vm1204, %v1206, %v1202
        %v1208 = vmul.f32 1.0, %v1207
        %v1209 = vrcp.pop %v939
        %v1210 = vmul.f32 %v939, %v1209
        %v1211 = vsub.f32 1.0, %v1210
        %v1212 = vmul.f32 %v1209, %v1211
        %v1213 = vadd.f32 %v1209, %v1212
        %vm1214 = vweird.f32 %v939
        %vm1215 = vweird.f32 %v1209
        %vm1216 = vmor %vm1214, %vm1215
        %v1217 = vsel %vm1216, %v1209, %v1213
        %v1218 = vand.u32 2147483647, %v939
        %vm1219 = vcmp.eq.f32.partialorder %v1218, 8.507059e+37
        %v1220 = vand.u32 %v939, 2147483648
        %v1221 = vor.u32 1.1754944e-38, %v1220
        %v1222 = vsel %vm1219, %v1221, %v1217
        %v1223 = vmul.f32 1.0, %v1222
        %v1224 = vrcp.pop %v940
        %v1225 = vmul.f32 %v940, %v1224
        %v1226 = vsub.f32 1.0, %v1225
        %v1227 = vmul.f32 %v1224, %v1226
        %v1228 = vadd.f32 %v1224, %v1227
        %vm1229 = vweird.f32 %v940
        %vm1230 = vweird.f32 %v1224
        %vm1231 = vmor %vm1229, %vm1230
        %v1232 = vsel %vm1231, %v1224, %v1228
        %v1233 = vand.u32 2147483647, %v940
        %vm1234 = vcmp.eq.f32.partialorder %v1233, 8.507059e+37
        %v1235 = vand.u32 %v940, 2147483648
        %v1236 = vor.u32 1.1754944e-38, %v1235
        %v1237 = vsel %vm1234, %v1236, %v1232
        %v1238 = vmul.f32 1.0, %v1237
        %v1239 = vrcp.pop %v941
        %v1240 = vmul.f32 %v941, %v1239
        %v1241 = vsub.f32 1.0, %v1240
        %v1242 = vmul.f32 %v1239, %v1241
        %v1243 = vadd.f32 %v1239, %v1242
        %vm1244 = vweird.f32 %v941
        %vm1245 = vweird.f32 %v1239
        %vm1246 = vmor %vm1244, %vm1245
        %v1247 = vsel %vm1246, %v1239, %v1243
        %v1248 = vand.u32 2147483647, %v941
        %vm1249 = vcmp.eq.f32.partialorder %v1248, 8.507059e+37
        %v1250 = vand.u32 %v941, 2147483648
        %v1251 = vor.u32 1.1754944e-38, %v1250
        %v1252 = vsel %vm1249, %v1251, %v1247
        %v1253 = vmul.f32 1.0, %v1252
        %v1254 = vrcp.pop %v942
        %v1255 = vmul.f32 %v942, %v1254
        %v1256 = vsub.f32 1.0, %v1255
        %v1257 = vmul.f32 %v1254, %v1256
        %v1258 = vadd.f32 %v1254, %v1257
        %vm1259 = vweird.f32 %v942
        %vm1260 = vweird.f32 %v1254
        %vm1261 = vmor %vm1259, %vm1260
        %v1262 = vsel %vm1261, %v1254, %v1258
        %v1263 = vand.u32 2147483647, %v942
        %vm1264 = vcmp.eq.f32.partialorder %v1263, 8.507059e+37
        %v1265 = vand.u32 %v942, 2147483648
        %v1266 = vor.u32 1.1754944e-38, %v1265
        %v1267 = vsel %vm1264, %v1266, %v1262
        %v1268 = vmul.f32 1.0, %v1267
        %v1269 = vrcp.pop %v943
        %v1270 = vmul.f32 %v943, %v1269
        %v1271 = vsub.f32 1.0, %v1270
        %v1272 = vmul.f32 %v1269, %v1271
        %v1273 = vadd.f32 %v1269, %v1272
        %vm1274 = vweird.f32 %v943
        %vm1275 = vweird.f32 %v1269
        %vm1276 = vmor %vm1274, %vm1275
        %v1277 = vsel %vm1276, %v1269, %v1273
        %v1278 = vand.u32 2147483647, %v943
        %vm1279 = vcmp.eq.f32.partialorder %v1278, 8.507059e+37
        %v1280 = vand.u32 %v943, 2147483648
        %v1281 = vor.u32 1.1754944e-38, %v1280
        %v1282 = vsel %vm1279, %v1281, %v1277
        %v1283 = vmul.f32 1.0, %v1282
        %v1284 = vrcp.pop %v944
        %v1285 = vmul.f32 %v944, %v1284
        %v1286 = vsub.f32 1.0, %v1285
        %v1287 = vmul.f32 %v1284, %v1286
        %v1288 = vadd.f32 %v1284, %v1287
        %vm1289 = vweird.f32 %v944
        %vm1290 = vweird.f32 %v1284
        %vm1291 = vmor %vm1289, %vm1290
        %v1292 = vsel %vm1291, %v1284, %v1288
        %v1293 = vand.u32 2147483647, %v944
        %vm1294 = vcmp.eq.f32.partialorder %v1293, 8.507059e+37
        %v1295 = vand.u32 %v944, 2147483648
        %v1296 = vor.u32 1.1754944e-38, %v1295
        %v1297 = vsel %vm1294, %v1296, %v1292
        %v1298 = vmul.f32 1.0, %v1297
        %v1299 = vrcp.pop %v945
        %v1300 = vmul.f32 %v945, %v1299
        %v1301 = vsub.f32 1.0, %v1300
        %v1302 = vmul.f32 %v1299, %v1301
        %v1303 = vadd.f32 %v1299, %v1302
        %vm1304 = vweird.f32 %v945
        %vm1305 = vweird.f32 %v1299
        %vm1306 = vmor %vm1304, %vm1305
        %v1307 = vsel %vm1306, %v1299, %v1303
        %v1308 = vand.u32 2147483647, %v945
        %vm1309 = vcmp.eq.f32.partialorder %v1308, 8.507059e+37
        %v1310 = vand.u32 %v945, 2147483648
        %v1311 = vor.u32 1.1754944e-38, %v1310
        %v1312 = vsel %vm1309, %v1311, %v1307
        %v1313 = vmul.f32 1.0, %v1312
        %v1314 = vrcp.pop %v946
        %v1315 = vmul.f32 %v946, %v1314
        %v1316 = vsub.f32 1.0, %v1315
        %v1317 = vmul.f32 %v1314, %v1316
        %v1318 = vadd.f32 %v1314, %v1317
        %vm1319 = vweird.f32 %v946
        %vm1320 = vweird.f32 %v1314
        %vm1321 = vmor %vm1319, %vm1320
        %v1322 = vsel %vm1321, %v1314, %v1318
        %v1323 = vand.u32 2147483647, %v946
        %vm1324 = vcmp.eq.f32.partialorder %v1323, 8.507059e+37
        %v1325 = vand.u32 %v946, 2147483648
        %v1326 = vor.u32 1.1754944e-38, %v1325
        %v1327 = vsel %vm1324, %v1326, %v1322
        %v1328 = vmul.f32 1.0, %v1327
        %v1329 = vrcp.pop %v947
        %v1330 = vmul.f32 %v947, %v1329
        %v1331 = vsub.f32 1.0, %v1330
        %v1332 = vmul.f32 %v1329, %v1331
        %v1333 = vadd.f32 %v1329, %v1332
        %vm1334 = vweird.f32 %v947
        %vm1335 = vweird.f32 %v1329
        %vm1336 = vmor %vm1334, %vm1335
        %v1337 = vsel %vm1336, %v1329, %v1333
        %v1338 = vand.u32 2147483647, %v947
        %vm1339 = vcmp.eq.f32.partialorder %v1338, 8.507059e+37
        %v1340 = vand.u32 %v947, 2147483648
        %v1341 = vor.u32 1.1754944e-38, %v1340
        %v1342 = vsel %vm1339, %v1341, %v1337
        %v1343 = vmul.f32 1.0, %v1342
        %v1344 = vrcp.pop %v948
        %v1345 = vmul.f32 %v948, %v1344
        %v1346 = vsub.f32 1.0, %v1345
        %v1347 = vmul.f32 %v1344, %v1346
        %v1348 = vadd.f32 %v1344, %v1347
        %vm1349 = vweird.f32 %v948
        %vm1350 = vweird.f32 %v1344
        %vm1351 = vmor %vm1349, %vm1350
        %v1352 = vsel %vm1351, %v1344, %v1348
        %v1353 = vand.u32 2147483647, %v948
        %vm1354 = vcmp.eq.f32.partialorder %v1353, 8.507059e+37
        %v1355 = vand.u32 %v948, 2147483648
        %v1356 = vor.u32 1.1754944e-38, %v1355
        %v1357 = vsel %vm1354, %v1356, %v1352
        %v1358 = vmul.f32 1.0, %v1357
        %v1359 = vrcp.pop %v949
        %v1360 = vmul.f32 %v949, %v1359
        %v1361 = vsub.f32 1.0, %v1360
        %v1362 = vmul.f32 %v1359, %v1361
        %v1363 = vadd.f32 %v1359, %v1362
        %vm1364 = vweird.f32 %v949
        %vm1365 = vweird.f32 %v1359
        %vm1366 = vmor %vm1364, %vm1365
        %v1367 = vsel %vm1366, %v1359, %v1363
        %v1368 = vand.u32 2147483647, %v949
        %vm1369 = vcmp.eq.f32.partialorder %v1368, 8.507059e+37
        %v1370 = vand.u32 %v949, 2147483648
        %v1371 = vor.u32 1.1754944e-38, %v1370
        %v1372 = vsel %vm1369, %v1371, %v1367
        %v1373 = vmul.f32 1.0, %v1372
        %v1374 = vrcp.pop %v950
        %v1375 = vmul.f32 %v950, %v1374
        %v1376 = vsub.f32 1.0, %v1375
        %v1377 = vmul.f32 %v1374, %v1376
        %v1378 = vadd.f32 %v1374, %v1377
        %vm1379 = vweird.f32 %v950
        %vm1380 = vweird.f32 %v1374
        %vm1381 = vmor %vm1379, %vm1380
        %v1382 = vsel %vm1381, %v1374, %v1378
        %v1383 = vand.u32 2147483647, %v950
        %vm1384 = vcmp.eq.f32.partialorder %v1383, 8.507059e+37
        %v1385 = vand.u32 %v950, 2147483648
        %v1386 = vor.u32 1.1754944e-38, %v1385
        %v1387 = vsel %vm1384, %v1386, %v1382
        %v1388 = vmul.f32 1.0, %v1387
        %v1389 = vrcp.pop %v951
        %v1390 = vmul.f32 %v951, %v1389
        %v1391 = vsub.f32 1.0, %v1390
        %v1392 = vmul.f32 %v1389, %v1391
        %v1393 = vadd.f32 %v1389, %v1392
        %vm1394 = vweird.f32 %v951
        %vm1395 = vweird.f32 %v1389
        %vm1396 = vmor %vm1394, %vm1395
        %v1397 = vsel %vm1396, %v1389, %v1393
        %v1398 = vand.u32 2147483647, %v951
        %vm1399 = vcmp.eq.f32.partialorder %v1398, 8.507059e+37
        %v1400 = vand.u32 %v951, 2147483648
        %v1401 = vor.u32 1.1754944e-38, %v1400
        %v1402 = vsel %vm1399, %v1401, %v1397
        %v1403 = vmul.f32 1.0, %v1402
        %v1404 = vrcp.pop %v952
        %v1405 = vmul.f32 %v952, %v1404
        %v1406 = vsub.f32 1.0, %v1405
        %v1407 = vmul.f32 %v1404, %v1406
        %v1408 = vadd.f32 %v1404, %v1407
        %vm1409 = vweird.f32 %v952
        %vm1410 = vweird.f32 %v1404
        %vm1411 = vmor %vm1409, %vm1410
        %v1412 = vsel %vm1411, %v1404, %v1408
        %v1413 = vand.u32 2147483647, %v952
        %vm1414 = vcmp.eq.f32.partialorder %v1413, 8.507059e+37
        %v1415 = vand.u32 %v952, 2147483648
        %v1416 = vor.u32 1.1754944e-38, %v1415
        %v1417 = vsel %vm1414, %v1416, %v1412
        %v1418 = vmul.f32 1.0, %v1417
        %v1419 = vrcp.pop %v953
        %v1420 = vmul.f32 %v953, %v1419
        %v1421 = vsub.f32 1.0, %v1420
        %v1422 = vmul.f32 %v1419, %v1421
        %v1423 = vadd.f32 %v1419, %v1422
        %vm1424 = vweird.f32 %v953
        %vm1425 = vweird.f32 %v1419
        %vm1426 = vmor %vm1424, %vm1425
        %v1427 = vsel %vm1426, %v1419, %v1423
        %v1428 = vand.u32 2147483647, %v953
        %vm1429 = vcmp.eq.f32.partialorder %v1428, 8.507059e+37
        %v1430 = vand.u32 %v953, 2147483648
        %v1431 = vor.u32 1.1754944e-38, %v1430
        %v1432 = vsel %vm1429, %v1431, %v1427
        %v1433 = vmul.f32 1.0, %v1432
        %v1434 = vpack.c.bf16 %v998, %v968
        %v1435 = vpack.c.bf16 %v1013, %v983
        %v1436 = vpack.c.bf16 %v1058, %v1028
        %v1437 = vpack.c.bf16 %v1073, %v1043
        %v1438 = vpack.c.bf16 %v1118, %v1088
        %v1439 = vpack.c.bf16 %v1133, %v1103
        %v1440 = vpack.c.bf16 %v1178, %v1148
        %v1441 = vpack.c.bf16 %v1193, %v1163
        %v1442 = vpack.c.bf16 %v1238, %v1208
        %v1443 = vpack.c.bf16 %v1253, %v1223
        %v1444 = vpack.c.bf16 %v1298, %v1268
        %v1445 = vpack.c.bf16 %v1313, %v1283
        %v1446 = vpack.c.bf16 %v1358, %v1328
        %v1447 = vpack.c.bf16 %v1373, %v1343
        %v1448 = vpack.c.bf16 %v1418, %v1388
        %v1449 = vpack.c.bf16 %v1433, %v1403
        %v1451 = vperm.slane %v363, 0
        %v1452 = vperm.slane %v363, 2
        %v1455 = vperm.slane %v1451, 0
        %v1456 = vperm.slane %v1452, 0
        %v1489 = vunpack.c.l.b16 %v330
        %v1490 = vunpack.c.h.b16 %v330
        %v1491 = vunpack.c.l.b16 %v331
        %v1492 = vunpack.c.h.b16 %v331
        %v1493 = vunpack.c.l.b16 %v332
        %v1494 = vunpack.c.h.b16 %v332
        %v1495 = vunpack.c.l.b16 %v333
        %v1496 = vunpack.c.h.b16 %v333
        %v1497 = vunpack.c.l.b16 %v334
        %v1498 = vunpack.c.h.b16 %v334
        %v1499 = vunpack.c.l.b16 %v335
        %v1500 = vunpack.c.h.b16 %v335
        %v1501 = vunpack.c.l.b16 %v336
        %v1502 = vunpack.c.h.b16 %v336
        %v1503 = vunpack.c.l.b16 %v337
        %v1504 = vunpack.c.h.b16 %v337
        %v1505 = vunpack.c.l.b16 %v338
        %v1506 = vunpack.c.h.b16 %v338
        %v1507 = vunpack.c.l.b16 %v339
        %v1508 = vunpack.c.h.b16 %v339
        %v1509 = vunpack.c.l.b16 %v340
        %v1510 = vunpack.c.h.b16 %v340
        %v1511 = vunpack.c.l.b16 %v341
        %v1512 = vunpack.c.h.b16 %v341
        %v1513 = vunpack.c.l.b16 %v342
        %v1514 = vunpack.c.h.b16 %v342
        %v1515 = vunpack.c.l.b16 %v343
        %v1516 = vunpack.c.h.b16 %v343
        %v1517 = vunpack.c.l.b16 %v344
        %v1518 = vunpack.c.h.b16 %v344
        %v1519 = vunpack.c.l.b16 %v345
        %v1520 = vunpack.c.h.b16 %v345
        %v1521 = vunpack.c.l.b16 %v346
        %v1522 = vunpack.c.h.b16 %v346
        %v1523 = vunpack.c.l.b16 %v347
        %v1524 = vunpack.c.h.b16 %v347
        %v1525 = vunpack.c.l.b16 %v348
        %v1526 = vunpack.c.h.b16 %v348
        %v1527 = vunpack.c.l.b16 %v349
        %v1528 = vunpack.c.h.b16 %v349
        %v1529 = vunpack.c.l.b16 %v350
        %v1530 = vunpack.c.h.b16 %v350
        %v1531 = vunpack.c.l.b16 %v351
        %v1532 = vunpack.c.h.b16 %v351
        %v1533 = vunpack.c.l.b16 %v352
        %v1534 = vunpack.c.h.b16 %v352
        %v1535 = vunpack.c.l.b16 %v353
        %v1536 = vunpack.c.h.b16 %v353
        %v1537 = vunpack.c.l.b16 %v354
        %v1538 = vunpack.c.h.b16 %v354
        %v1539 = vunpack.c.l.b16 %v355
        %v1540 = vunpack.c.h.b16 %v355
        %v1541 = vunpack.c.l.b16 %v356
        %v1542 = vunpack.c.h.b16 %v356
        %v1543 = vunpack.c.l.b16 %v357
        %v1544 = vunpack.c.h.b16 %v357
        %v1545 = vunpack.c.l.b16 %v358
        %v1546 = vunpack.c.h.b16 %v358
        %v1547 = vunpack.c.l.b16 %v359
        %v1548 = vunpack.c.h.b16 %v359
        %v1549 = vunpack.c.l.b16 %v360
        %v1550 = vunpack.c.h.b16 %v360
        %v1551 = vunpack.c.l.b16 %v361
        %v1552 = vunpack.c.h.b16 %v361
        %v1553 = vpack.c.b16 %v1491, %v1489
        %v1554 = vpack.c.b16 %v1492, %v1490
        %v1555 = vpack.c.b16 %v1495, %v1493
        %v1556 = vpack.c.b16 %v1496, %v1494
        %v1557 = vpack.c.b16 %v1499, %v1497
        %v1558 = vpack.c.b16 %v1500, %v1498
        %v1559 = vpack.c.b16 %v1503, %v1501
        %v1560 = vpack.c.b16 %v1504, %v1502
        %v1561 = vpack.c.b16 %v1507, %v1505
        %v1562 = vpack.c.b16 %v1508, %v1506
        %v1563 = vpack.c.b16 %v1511, %v1509
        %v1564 = vpack.c.b16 %v1512, %v1510
        %v1565 = vpack.c.b16 %v1515, %v1513
        %v1566 = vpack.c.b16 %v1516, %v1514
        %v1567 = vpack.c.b16 %v1519, %v1517
        %v1568 = vpack.c.b16 %v1520, %v1518
        %v1569 = vpack.c.b16 %v1523, %v1521
        %v1570 = vpack.c.b16 %v1524, %v1522
        %v1571 = vpack.c.b16 %v1527, %v1525
        %v1572 = vpack.c.b16 %v1528, %v1526
        %v1573 = vpack.c.b16 %v1531, %v1529
        %v1574 = vpack.c.b16 %v1532, %v1530
        %v1575 = vpack.c.b16 %v1535, %v1533
        %v1576 = vpack.c.b16 %v1536, %v1534
        %v1577 = vpack.c.b16 %v1539, %v1537
        %v1578 = vpack.c.b16 %v1540, %v1538
        %v1579 = vpack.c.b16 %v1543, %v1541
        %v1580 = vpack.c.b16 %v1544, %v1542
        %v1581 = vpack.c.b16 %v1547, %v1545
        %v1582 = vpack.c.b16 %v1548, %v1546
        %v1583 = vpack.c.b16 %v1551, %v1549
        %v1584 = vpack.c.b16 %v1552, %v1550
        %1617 = vmatpush.bf16.msra.mxu0 %v1567
        %1618 = vmatpush.bf16.msra.mxu0 %v1565
        %1619 = vmatpush.bf16.msra.mxu0 %v1563
        %1620 = vmatpush.bf16.msra.mxu0 %v1561
        %1621 = vmatpush.bf16.msra.mxu0 %v1559
        %1622 = vmatpush.bf16.msra.mxu0 %v1557
        %1623 = vmatpush.bf16.msra.mxu0 %v1555
        %1624 = vmatpush.bf16.msra.mxu0 %v1553
        %1625 = vmatmul.bf16.gmra.mxu0 %v1434
        %v1626 = vpop.f32.mrf.mxu0
        %v1627 = vadd.f32 %v1455, %v1626
        %v1628 = vpop.f32.mrf.mxu0
        %v1629 = vadd.f32 %v1455, %v1628
        %1630 = vmatmul.bf16.gmra.mxu0 %v1436
        %v1631 = vpop.f32.mrf.mxu0
        %v1632 = vadd.f32 %v1455, %v1631
        %v1633 = vpop.f32.mrf.mxu0
        %v1634 = vadd.f32 %v1455, %v1633
        %1635 = vmatmul.bf16.gmra.mxu0 %v1438
        %v1636 = vpop.f32.mrf.mxu0
        %v1637 = vadd.f32 %v1455, %v1636
        %v1638 = vpop.f32.mrf.mxu0
        %v1639 = vadd.f32 %v1455, %v1638
        %1640 = vmatmul.bf16.gmra.mxu0 %v1440
        %v1641 = vpop.f32.mrf.mxu0
        %v1642 = vadd.f32 %v1455, %v1641
        %v1643 = vpop.f32.mrf.mxu0
        %v1644 = vadd.f32 %v1455, %v1643
        %1645 = vmatmul.bf16.gmra.mxu0 %v1442
        %v1646 = vpop.f32.mrf.mxu0
        %v1647 = vadd.f32 %v1455, %v1646
        %v1648 = vpop.f32.mrf.mxu0
        %v1649 = vadd.f32 %v1455, %v1648
        %1650 = vmatmul.bf16.gmra.mxu0 %v1444
        %v1651 = vpop.f32.mrf.mxu0
        %v1652 = vadd.f32 %v1455, %v1651
        %v1653 = vpop.f32.mrf.mxu0
        %v1654 = vadd.f32 %v1455, %v1653
        %1655 = vmatmul.bf16.gmra.mxu0 %v1446
        %v1656 = vpop.f32.mrf.mxu0
        %v1657 = vadd.f32 %v1455, %v1656
        %v1658 = vpop.f32.mrf.mxu0
        %v1659 = vadd.f32 %v1455, %v1658
        %1660 = vmatmul.bf16.gmra.mxu0 %v1448
        %v1661 = vpop.f32.mrf.mxu0
        %v1662 = vadd.f32 %v1455, %v1661
        %v1663 = vpop.f32.mrf.mxu0
        %v1664 = vadd.f32 %v1455, %v1663
        %1665 = vdwg.mxu0
        %1666 = vmatpush.bf16.msra.mxu0 %v1583
        %1667 = vmatpush.bf16.msra.mxu0 %v1581
        %1668 = vmatpush.bf16.msra.mxu0 %v1579
        %1669 = vmatpush.bf16.msra.mxu0 %v1577
        %1670 = vmatpush.bf16.msra.mxu0 %v1575
        %1671 = vmatpush.bf16.msra.mxu0 %v1573
        %1672 = vmatpush.bf16.msra.mxu0 %v1571
        %1673 = vmatpush.bf16.msra.mxu0 %v1569
        %1674 = vmatmul.bf16.gmra.mxu0 %v1435
        %v1675 = vpop.f32.mrf.mxu0
        %v1676 = vadd.f32 %v1627, %v1675
        %v1677 = vpop.f32.mrf.mxu0
        %v1678 = vadd.f32 %v1629, %v1677
        %1679 = vmatmul.bf16.gmra.mxu0 %v1437
        %v1680 = vpop.f32.mrf.mxu0
        %v1681 = vadd.f32 %v1632, %v1680
        %v1682 = vpop.f32.mrf.mxu0
        %v1683 = vadd.f32 %v1634, %v1682
        %1684 = vmatmul.bf16.gmra.mxu0 %v1439
        %v1685 = vpop.f32.mrf.mxu0
        %v1686 = vadd.f32 %v1637, %v1685
        %v1687 = vpop.f32.mrf.mxu0
        %v1688 = vadd.f32 %v1639, %v1687
        %1689 = vmatmul.bf16.gmra.mxu0 %v1441
        %v1690 = vpop.f32.mrf.mxu0
        %v1691 = vadd.f32 %v1642, %v1690
        %v1692 = vpop.f32.mrf.mxu0
        %v1693 = vadd.f32 %v1644, %v1692
        %1694 = vmatmul.bf16.gmra.mxu0 %v1443
        %v1695 = vpop.f32.mrf.mxu0
        %v1696 = vadd.f32 %v1647, %v1695
        %v1697 = vpop.f32.mrf.mxu0
        %v1698 = vadd.f32 %v1649, %v1697
        %1699 = vmatmul.bf16.gmra.mxu0 %v1445
        %v1700 = vpop.f32.mrf.mxu0
        %v1701 = vadd.f32 %v1652, %v1700
        %v1702 = vpop.f32.mrf.mxu0
        %v1703 = vadd.f32 %v1654, %v1702
        %1704 = vmatmul.bf16.gmra.mxu0 %v1447
        %v1705 = vpop.f32.mrf.mxu0
        %v1706 = vadd.f32 %v1657, %v1705
        %v1707 = vpop.f32.mrf.mxu0
        %v1708 = vadd.f32 %v1659, %v1707
        %1709 = vmatmul.bf16.gmra.mxu0 %v1449
        %v1710 = vpop.f32.mrf.mxu0
        %v1711 = vadd.f32 %v1662, %v1710
        %v1712 = vpop.f32.mrf.mxu0
        %v1713 = vadd.f32 %v1664, %v1712
        %1714 = vdwg.mxu0
        %1715 = vmatpush.bf16.msra.mxu0 %v1568
        %1716 = vmatpush.bf16.msra.mxu0 %v1566
        %1717 = vmatpush.bf16.msra.mxu0 %v1564
        %1718 = vmatpush.bf16.msra.mxu0 %v1562
        %1719 = vmatpush.bf16.msra.mxu0 %v1560
        %1720 = vmatpush.bf16.msra.mxu0 %v1558
        %1721 = vmatpush.bf16.msra.mxu0 %v1556
        %1722 = vmatpush.bf16.msra.mxu0 %v1554
        %1723 = vmatmul.bf16.gmra.mxu0 %v1434
        %v1724 = vpop.f32.mrf.mxu0
        %v1725 = vadd.f32 %v1456, %v1724
        %v1726 = vpop.f32.mrf.mxu0
        %v1727 = vadd.f32 %v1456, %v1726
        %1728 = vmatmul.bf16.gmra.mxu0 %v1436
        %v1729 = vpop.f32.mrf.mxu0
        %v1730 = vadd.f32 %v1456, %v1729
        %v1731 = vpop.f32.mrf.mxu0
        %v1732 = vadd.f32 %v1456, %v1731
        %1733 = vmatmul.bf16.gmra.mxu0 %v1438
        %v1734 = vpop.f32.mrf.mxu0
        %v1735 = vadd.f32 %v1456, %v1734
        %v1736 = vpop.f32.mrf.mxu0
        %v1737 = vadd.f32 %v1456, %v1736
        %1738 = vmatmul.bf16.gmra.mxu0 %v1440
        %v1739 = vpop.f32.mrf.mxu0
        %v1740 = vadd.f32 %v1456, %v1739
        %v1741 = vpop.f32.mrf.mxu0
        %v1742 = vadd.f32 %v1456, %v1741
        %1743 = vmatmul.bf16.gmra.mxu0 %v1442
        %v1744 = vpop.f32.mrf.mxu0
        %v1745 = vadd.f32 %v1456, %v1744
        %v1746 = vpop.f32.mrf.mxu0
        %v1747 = vadd.f32 %v1456, %v1746
        %1748 = vmatmul.bf16.gmra.mxu0 %v1444
        %v1749 = vpop.f32.mrf.mxu0
        %v1750 = vadd.f32 %v1456, %v1749
        %v1751 = vpop.f32.mrf.mxu0
        %v1752 = vadd.f32 %v1456, %v1751
        %1753 = vmatmul.bf16.gmra.mxu0 %v1446
        %v1754 = vpop.f32.mrf.mxu0
        %v1755 = vadd.f32 %v1456, %v1754
        %v1756 = vpop.f32.mrf.mxu0
        %v1757 = vadd.f32 %v1456, %v1756
        %1758 = vmatmul.bf16.gmra.mxu0 %v1448
        %v1759 = vpop.f32.mrf.mxu0
        %v1760 = vadd.f32 %v1456, %v1759
        %v1761 = vpop.f32.mrf.mxu0
        %v1762 = vadd.f32 %v1456, %v1761
        %1763 = vdwg.mxu0
        %1764 = vmatpush.bf16.msra.mxu0 %v1584
        %1765 = vmatpush.bf16.msra.mxu0 %v1582
        %1766 = vmatpush.bf16.msra.mxu0 %v1580
        %1767 = vmatpush.bf16.msra.mxu0 %v1578
        %1768 = vmatpush.bf16.msra.mxu0 %v1576
        %1769 = vmatpush.bf16.msra.mxu0 %v1574
        %1770 = vmatpush.bf16.msra.mxu0 %v1572
        %1771 = vmatpush.bf16.msra.mxu0 %v1570
        %1772 = vmatmul.bf16.gmra.mxu0 %v1435
        %v1773 = vpop.f32.mrf.mxu0
        %v1774 = vadd.f32 %v1725, %v1773
        %v1775 = vpop.f32.mrf.mxu0
        %v1776 = vadd.f32 %v1727, %v1775
        %1777 = vmatmul.bf16.gmra.mxu0 %v1437
        %v1778 = vpop.f32.mrf.mxu0
        %v1779 = vadd.f32 %v1730, %v1778
        %v1780 = vpop.f32.mrf.mxu0
        %v1781 = vadd.f32 %v1732, %v1780
        %1782 = vmatmul.bf16.gmra.mxu0 %v1439
        %v1783 = vpop.f32.mrf.mxu0
        %v1784 = vadd.f32 %v1735, %v1783
        %v1785 = vpop.f32.mrf.mxu0
        %v1786 = vadd.f32 %v1737, %v1785
        %1787 = vmatmul.bf16.gmra.mxu0 %v1441
        %v1788 = vpop.f32.mrf.mxu0
        %v1789 = vadd.f32 %v1740, %v1788
        %v1790 = vpop.f32.mrf.mxu0
        %v1791 = vadd.f32 %v1742, %v1790
        %1792 = vmatmul.bf16.gmra.mxu0 %v1443
        %v1793 = vpop.f32.mrf.mxu0
        %v1794 = vadd.f32 %v1745, %v1793
        %v1795 = vpop.f32.mrf.mxu0
        %v1796 = vadd.f32 %v1747, %v1795
        %1797 = vmatmul.bf16.gmra.mxu0 %v1445
        %v1798 = vpop.f32.mrf.mxu0
        %v1799 = vadd.f32 %v1750, %v1798
        %v1800 = vpop.f32.mrf.mxu0
        %v1801 = vadd.f32 %v1752, %v1800
        %1802 = vmatmul.bf16.gmra.mxu0 %v1447
        %v1803 = vpop.f32.mrf.mxu0
        %v1804 = vadd.f32 %v1755, %v1803
        %v1805 = vpop.f32.mrf.mxu0
        %v1806 = vadd.f32 %v1757, %v1805
        %1807 = vmatmul.bf16.gmra.mxu0 %v1449
        %v1808 = vpop.f32.mrf.mxu0
        %v1809 = vadd.f32 %v1760, %v1808
        %v1810 = vpop.f32.mrf.mxu0
        %v1811 = vadd.f32 %v1762, %v1810
        %1812 = vdwg.mxu0
        %v1813 = vpack.c.bf16 %v1774, %v1676
        %v1814 = vpack.c.bf16 %v1776, %v1678
        %v1815 = vpack.c.bf16 %v1779, %v1681
        %v1816 = vpack.c.bf16 %v1781, %v1683
        %v1817 = vpack.c.bf16 %v1784, %v1686
        %v1818 = vpack.c.bf16 %v1786, %v1688
        %v1819 = vpack.c.bf16 %v1789, %v1691
        %v1820 = vpack.c.bf16 %v1791, %v1693
        %v1821 = vpack.c.bf16 %v1794, %v1696
        %v1822 = vpack.c.bf16 %v1796, %v1698
        %v1823 = vpack.c.bf16 %v1799, %v1701
        %v1824 = vpack.c.bf16 %v1801, %v1703
        %v1825 = vpack.c.bf16 %v1804, %v1706
        %v1826 = vpack.c.bf16 %v1806, %v1708
        %v1827 = vpack.c.bf16 %v1809, %v1711
        %v1828 = vpack.c.bf16 %v1811, %v1713
        %s1829 = smul.addr %s364, 4
        %s1830 = scalar_lea.vmem %s293, %s1829 [#allocation10]
        %1831 = vst [vmem:[%s1830] sm:$0xff] %v1813
        %1832 = vst [vmem:[%s1830 + $0x8] sm:$0xff] %v1814
        %1833 = vst [vmem:[%s1830 + $0x10] sm:$0xff] %v1815
        %1834 = vst [vmem:[%s1830 + $0x18] sm:$0xff] %v1816
        %1835 = vst [vmem:[%s1830 + $0x20] sm:$0xff] %v1817
        %1836 = vst [vmem:[%s1830 + $0x28] sm:$0xff] %v1818
        %1837 = vst [vmem:[%s1830 + $0x30] sm:$0xff] %v1819
        %1838 = vst [vmem:[%s1830 + $0x38] sm:$0xff] %v1820
        %1839 = vst [vmem:[%s1830 + $0x40] sm:$0xff] %v1821
        %1840 = vst [vmem:[%s1830 + $0x48] sm:$0xff] %v1822
        %1841 = vst [vmem:[%s1830 + $0x50] sm:$0xff] %v1823
        %1842 = vst [vmem:[%s1830 + $0x58] sm:$0xff] %v1824
        %1843 = vst [vmem:[%s1830 + $0x60] sm:$0xff] %v1825
        %1844 = vst [vmem:[%s1830 + $0x68] sm:$0xff] %v1826
        %1845 = vst [vmem:[%s1830 + $0x70] sm:$0xff] %v1827
        %1846 = vst [vmem:[%s1830 + $0x78] sm:$0xff] %v1828
        %s1847 = smul.u32 16, 2
        %s1848 = smul.addr %s1847, 4
        %s1849 = scalar_lea.vmem %s251, %s1848 [#allocation2]
        %v1850 = vld [vmem:[%s1849] sm:$0xff]
        %v1851 = vld [vmem:[%s1849 + $0x8] sm:$0xff]
        %v1852 = vld [vmem:[%s1849 + $0x10] sm:$0xff]
        %v1853 = vld [vmem:[%s1849 + $0x18] sm:$0xff]
        %v1854 = vld [vmem:[%s1849 + $0x20] sm:$0xff]
        %v1855 = vld [vmem:[%s1849 + $0x28] sm:$0xff]
        %v1856 = vld [vmem:[%s1849 + $0x30] sm:$0xff]
        %v1857 = vld [vmem:[%s1849 + $0x38] sm:$0xff]
        %v1858 = vld [vmem:[%s1849 + $0x40] sm:$0xff]
        %v1859 = vld [vmem:[%s1849 + $0x48] sm:$0xff]
        %v1860 = vld [vmem:[%s1849 + $0x50] sm:$0xff]
        %v1861 = vld [vmem:[%s1849 + $0x58] sm:$0xff]
        %v1862 = vld [vmem:[%s1849 + $0x60] sm:$0xff]
        %v1863 = vld [vmem:[%s1849 + $0x68] sm:$0xff]
        %v1864 = vld [vmem:[%s1849 + $0x70] sm:$0xff]
        %v1865 = vld [vmem:[%s1849 + $0x78] sm:$0xff]
        %v1882 = vunpack.c.l.b16 %v1850
        %v1883 = vunpack.c.h.b16 %v1850
        %v1884 = vunpack.c.l.b16 %v1851
        %v1885 = vunpack.c.h.b16 %v1851
        %v1886 = vunpack.c.l.b16 %v1852
        %v1887 = vunpack.c.h.b16 %v1852
        %v1888 = vunpack.c.l.b16 %v1853
        %v1889 = vunpack.c.h.b16 %v1853
        %v1890 = vunpack.c.l.b16 %v1854
        %v1891 = vunpack.c.h.b16 %v1854
        %v1892 = vunpack.c.l.b16 %v1855
        %v1893 = vunpack.c.h.b16 %v1855
        %v1894 = vunpack.c.l.b16 %v1856
        %v1895 = vunpack.c.h.b16 %v1856
        %v1896 = vunpack.c.l.b16 %v1857
        %v1897 = vunpack.c.h.b16 %v1857
        %v1898 = vunpack.c.l.b16 %v1858
        %v1899 = vunpack.c.h.b16 %v1858
        %v1900 = vunpack.c.l.b16 %v1859
        %v1901 = vunpack.c.h.b16 %v1859
        %v1902 = vunpack.c.l.b16 %v1860
        %v1903 = vunpack.c.h.b16 %v1860
        %v1904 = vunpack.c.l.b16 %v1861
        %v1905 = vunpack.c.h.b16 %v1861
        %v1906 = vunpack.c.l.b16 %v1862
        %v1907 = vunpack.c.h.b16 %v1862
        %v1908 = vunpack.c.l.b16 %v1863
        %v1909 = vunpack.c.h.b16 %v1863
        %v1910 = vunpack.c.l.b16 %v1864
        %v1911 = vunpack.c.h.b16 %v1864
        %v1912 = vunpack.c.l.b16 %v1865
        %v1913 = vunpack.c.h.b16 %v1865
        %v1914 = vpack.c.b16 %v1884, %v1882
        %v1915 = vpack.c.b16 %v1885, %v1883
        %v1916 = vpack.c.b16 %v1888, %v1886
        %v1917 = vpack.c.b16 %v1889, %v1887
        %v1918 = vpack.c.b16 %v1892, %v1890
        %v1919 = vpack.c.b16 %v1893, %v1891
        %v1920 = vpack.c.b16 %v1896, %v1894
        %v1921 = vpack.c.b16 %v1897, %v1895
        %v1922 = vpack.c.b16 %v1900, %v1898
        %v1923 = vpack.c.b16 %v1901, %v1899
        %v1924 = vpack.c.b16 %v1904, %v1902
        %v1925 = vpack.c.b16 %v1905, %v1903
        %v1926 = vpack.c.b16 %v1908, %v1906
        %v1927 = vpack.c.b16 %v1909, %v1907
        %v1928 = vpack.c.b16 %v1912, %v1910
        %v1929 = vpack.c.b16 %v1913, %v1911
        %1946 = vmatpush.bf16.msra.mxu0 %v580
        %1947 = vmatpush.bf16.msra.mxu0 %v578
        %1948 = vmatpush.bf16.msra.mxu0 %v576
        %1949 = vmatpush.bf16.msra.mxu0 %v574
        %1950 = vmatpush.bf16.msra.mxu0 %v572
        %1951 = vmatpush.bf16.msra.mxu0 %v570
        %1952 = vmatpush.bf16.msra.mxu0 %v568
        %1953 = vmatpush.bf16.msra.mxu0 %v566
        %1954 = vmatmul.bf16.gmra.mxu0 %v1914
        %v1955 = vpop.f32.mrf.mxu0
        %v1956 = vadd.f32 %v388, %v1955
        %v1957 = vpop.f32.mrf.mxu0
        %v1958 = vadd.f32 %v388, %v1957
        %1959 = vmatmul.bf16.gmra.mxu0 %v1916
        %v1960 = vpop.f32.mrf.mxu0
        %v1961 = vadd.f32 %v388, %v1960
        %v1962 = vpop.f32.mrf.mxu0
        %v1963 = vadd.f32 %v388, %v1962
        %1964 = vmatmul.bf16.gmra.mxu0 %v1918
        %v1965 = vpop.f32.mrf.mxu0
        %v1966 = vadd.f32 %v388, %v1965
        %v1967 = vpop.f32.mrf.mxu0
        %v1968 = vadd.f32 %v388, %v1967
        %1969 = vmatmul.bf16.gmra.mxu0 %v1920
        %v1970 = vpop.f32.mrf.mxu0
        %v1971 = vadd.f32 %v388, %v1970
        %v1972 = vpop.f32.mrf.mxu0
        %v1973 = vadd.f32 %v388, %v1972
        %1974 = vmatmul.bf16.gmra.mxu0 %v1922
        %v1975 = vpop.f32.mrf.mxu0
        %v1976 = vadd.f32 %v388, %v1975
        %v1977 = vpop.f32.mrf.mxu0
        %v1978 = vadd.f32 %v388, %v1977
        %1979 = vmatmul.bf16.gmra.mxu0 %v1924
        %v1980 = vpop.f32.mrf.mxu0
        %v1981 = vadd.f32 %v388, %v1980
        %v1982 = vpop.f32.mrf.mxu0
        %v1983 = vadd.f32 %v388, %v1982
        %1984 = vmatmul.bf16.gmra.mxu0 %v1926
        %v1985 = vpop.f32.mrf.mxu0
        %v1986 = vadd.f32 %v388, %v1985
        %v1987 = vpop.f32.mrf.mxu0
        %v1988 = vadd.f32 %v388, %v1987
        %1989 = vmatmul.bf16.gmra.mxu0 %v1928
        %v1990 = vpop.f32.mrf.mxu0
        %v1991 = vadd.f32 %v388, %v1990
        %v1992 = vpop.f32.mrf.mxu0
        %v1993 = vadd.f32 %v388, %v1992
        %1994 = vdwg.mxu0
        %1995 = vmatpush.bf16.msra.mxu0 %v596
        %1996 = vmatpush.bf16.msra.mxu0 %v594
        %1997 = vmatpush.bf16.msra.mxu0 %v592
        %1998 = vmatpush.bf16.msra.mxu0 %v590
        %1999 = vmatpush.bf16.msra.mxu0 %v588
        %2000 = vmatpush.bf16.msra.mxu0 %v586
        %2001 = vmatpush.bf16.msra.mxu0 %v584
        %2002 = vmatpush.bf16.msra.mxu0 %v582
        %2003 = vmatmul.bf16.gmra.mxu0 %v1915
        %v2004 = vpop.f32.mrf.mxu0
        %v2005 = vadd.f32 %v1956, %v2004
        %v2006 = vpop.f32.mrf.mxu0
        %v2007 = vadd.f32 %v1958, %v2006
        %2008 = vmatmul.bf16.gmra.mxu0 %v1917
        %v2009 = vpop.f32.mrf.mxu0
        %v2010 = vadd.f32 %v1961, %v2009
        %v2011 = vpop.f32.mrf.mxu0
        %v2012 = vadd.f32 %v1963, %v2011
        %2013 = vmatmul.bf16.gmra.mxu0 %v1919
        %v2014 = vpop.f32.mrf.mxu0
        %v2015 = vadd.f32 %v1966, %v2014
        %v2016 = vpop.f32.mrf.mxu0
        %v2017 = vadd.f32 %v1968, %v2016
        %2018 = vmatmul.bf16.gmra.mxu0 %v1921
        %v2019 = vpop.f32.mrf.mxu0
        %v2020 = vadd.f32 %v1971, %v2019
        %v2021 = vpop.f32.mrf.mxu0
        %v2022 = vadd.f32 %v1973, %v2021
        %2023 = vmatmul.bf16.gmra.mxu0 %v1923
        %v2024 = vpop.f32.mrf.mxu0
        %v2025 = vadd.f32 %v1976, %v2024
        %v2026 = vpop.f32.mrf.mxu0
        %v2027 = vadd.f32 %v1978, %v2026
        %2028 = vmatmul.bf16.gmra.mxu0 %v1925
        %v2029 = vpop.f32.mrf.mxu0
        %v2030 = vadd.f32 %v1981, %v2029
        %v2031 = vpop.f32.mrf.mxu0
        %v2032 = vadd.f32 %v1983, %v2031
        %2033 = vmatmul.bf16.gmra.mxu0 %v1927
        %v2034 = vpop.f32.mrf.mxu0
        %v2035 = vadd.f32 %v1986, %v2034
        %v2036 = vpop.f32.mrf.mxu0
        %v2037 = vadd.f32 %v1988, %v2036
        %2038 = vmatmul.bf16.gmra.mxu0 %v1929
        %v2039 = vpop.f32.mrf.mxu0
        %v2040 = vadd.f32 %v1991, %v2039
        %v2041 = vpop.f32.mrf.mxu0
        %v2042 = vadd.f32 %v1993, %v2041
        %2043 = vdwg.mxu0
        %2044 = vmatpush.bf16.msra.mxu0 %v581
        %2045 = vmatpush.bf16.msra.mxu0 %v579
        %2046 = vmatpush.bf16.msra.mxu0 %v577
        %2047 = vmatpush.bf16.msra.mxu0 %v575
        %2048 = vmatpush.bf16.msra.mxu0 %v573
        %2049 = vmatpush.bf16.msra.mxu0 %v571
        %2050 = vmatpush.bf16.msra.mxu0 %v569
        %2051 = vmatpush.bf16.msra.mxu0 %v567
        %2052 = vmatmul.bf16.gmra.mxu0 %v1914
        %v2053 = vpop.f32.mrf.mxu0
        %v2054 = vadd.f32 %v389, %v2053
        %v2055 = vpop.f32.mrf.mxu0
        %v2056 = vadd.f32 %v389, %v2055
        %2057 = vmatmul.bf16.gmra.mxu0 %v1916
        %v2058 = vpop.f32.mrf.mxu0
        %v2059 = vadd.f32 %v389, %v2058
        %v2060 = vpop.f32.mrf.mxu0
        %v2061 = vadd.f32 %v389, %v2060
        %2062 = vmatmul.bf16.gmra.mxu0 %v1918
        %v2063 = vpop.f32.mrf.mxu0
        %v2064 = vadd.f32 %v389, %v2063
        %v2065 = vpop.f32.mrf.mxu0
        %v2066 = vadd.f32 %v389, %v2065
        %2067 = vmatmul.bf16.gmra.mxu0 %v1920
        %v2068 = vpop.f32.mrf.mxu0
        %v2069 = vadd.f32 %v389, %v2068
        %v2070 = vpop.f32.mrf.mxu0
        %v2071 = vadd.f32 %v389, %v2070
        %2072 = vmatmul.bf16.gmra.mxu0 %v1922
        %v2073 = vpop.f32.mrf.mxu0
        %v2074 = vadd.f32 %v389, %v2073
        %v2075 = vpop.f32.mrf.mxu0
        %v2076 = vadd.f32 %v389, %v2075
        %2077 = vmatmul.bf16.gmra.mxu0 %v1924
        %v2078 = vpop.f32.mrf.mxu0
        %v2079 = vadd.f32 %v389, %v2078
        %v2080 = vpop.f32.mrf.mxu0
        %v2081 = vadd.f32 %v389, %v2080
        %2082 = vmatmul.bf16.gmra.mxu0 %v1926
        %v2083 = vpop.f32.mrf.mxu0
        %v2084 = vadd.f32 %v389, %v2083
        %v2085 = vpop.f32.mrf.mxu0
        %v2086 = vadd.f32 %v389, %v2085
        %2087 = vmatmul.bf16.gmra.mxu0 %v1928
        %v2088 = vpop.f32.mrf.mxu0
        %v2089 = vadd.f32 %v389, %v2088
        %v2090 = vpop.f32.mrf.mxu0
        %v2091 = vadd.f32 %v389, %v2090
        %2092 = vdwg.mxu0
        %2093 = vmatpush.bf16.msra.mxu0 %v597
        %2094 = vmatpush.bf16.msra.mxu0 %v595
        %2095 = vmatpush.bf16.msra.mxu0 %v593
        %2096 = vmatpush.bf16.msra.mxu0 %v591
        %2097 = vmatpush.bf16.msra.mxu0 %v589
        %2098 = vmatpush.bf16.msra.mxu0 %v587
        %2099 = vmatpush.bf16.msra.mxu0 %v585
        %2100 = vmatpush.bf16.msra.mxu0 %v583
        %2101 = vmatmul.bf16.gmra.mxu0 %v1915
        %v2102 = vpop.f32.mrf.mxu0
        %v2103 = vadd.f32 %v2054, %v2102
        %v2104 = vpop.f32.mrf.mxu0
        %v2105 = vadd.f32 %v2056, %v2104
        %2106 = vmatmul.bf16.gmra.mxu0 %v1917
        %v2107 = vpop.f32.mrf.mxu0
        %v2108 = vadd.f32 %v2059, %v2107
        %v2109 = vpop.f32.mrf.mxu0
        %v2110 = vadd.f32 %v2061, %v2109
        %2111 = vmatmul.bf16.gmra.mxu0 %v1919
        %v2112 = vpop.f32.mrf.mxu0
        %v2113 = vadd.f32 %v2064, %v2112
        %v2114 = vpop.f32.mrf.mxu0
        %v2115 = vadd.f32 %v2066, %v2114
        %2116 = vmatmul.bf16.gmra.mxu0 %v1921
        %v2117 = vpop.f32.mrf.mxu0
        %v2118 = vadd.f32 %v2069, %v2117
        %v2119 = vpop.f32.mrf.mxu0
        %v2120 = vadd.f32 %v2071, %v2119
        %2121 = vmatmul.bf16.gmra.mxu0 %v1923
        %v2122 = vpop.f32.mrf.mxu0
        %v2123 = vadd.f32 %v2074, %v2122
        %v2124 = vpop.f32.mrf.mxu0
        %v2125 = vadd.f32 %v2076, %v2124
        %2126 = vmatmul.bf16.gmra.mxu0 %v1925
        %v2127 = vpop.f32.mrf.mxu0
        %v2128 = vadd.f32 %v2079, %v2127
        %v2129 = vpop.f32.mrf.mxu0
        %v2130 = vadd.f32 %v2081, %v2129
        %2131 = vmatmul.bf16.gmra.mxu0 %v1927
        %v2132 = vpop.f32.mrf.mxu0
        %v2133 = vadd.f32 %v2084, %v2132
        %v2134 = vpop.f32.mrf.mxu0
        %v2135 = vadd.f32 %v2086, %v2134
        %2136 = vmatmul.bf16.gmra.mxu0 %v1929
        %v2137 = vpop.f32.mrf.mxu0
        %v2138 = vadd.f32 %v2089, %v2137
        %v2139 = vpop.f32.mrf.mxu0
        %v2140 = vadd.f32 %v2091, %v2139
        %2141 = vdwg.mxu0
        %v2142 = vxor.u32 %v2005, 2147483648
        %v2143 = vxor.u32 %v2103, 2147483648
        %v2144 = vxor.u32 %v2007, 2147483648
        %v2145 = vxor.u32 %v2105, 2147483648
        %v2146 = vxor.u32 %v2010, 2147483648
        %v2147 = vxor.u32 %v2108, 2147483648
        %v2148 = vxor.u32 %v2012, 2147483648
        %v2149 = vxor.u32 %v2110, 2147483648
        %v2150 = vxor.u32 %v2015, 2147483648
        %v2151 = vxor.u32 %v2113, 2147483648
        %v2152 = vxor.u32 %v2017, 2147483648
        %v2153 = vxor.u32 %v2115, 2147483648
        %v2154 = vxor.u32 %v2020, 2147483648
        %v2155 = vxor.u32 %v2118, 2147483648
        %v2156 = vxor.u32 %v2022, 2147483648
        %v2157 = vxor.u32 %v2120, 2147483648
        %v2158 = vxor.u32 %v2025, 2147483648
        %v2159 = vxor.u32 %v2123, 2147483648
        %v2160 = vxor.u32 %v2027, 2147483648
        %v2161 = vxor.u32 %v2125, 2147483648
        %v2162 = vxor.u32 %v2030, 2147483648
        %v2163 = vxor.u32 %v2128, 2147483648
        %v2164 = vxor.u32 %v2032, 2147483648
        %v2165 = vxor.u32 %v2130, 2147483648
        %v2166 = vxor.u32 %v2035, 2147483648
        %v2167 = vxor.u32 %v2133, 2147483648
        %v2168 = vxor.u32 %v2037, 2147483648
        %v2169 = vxor.u32 %v2135, 2147483648
        %v2170 = vxor.u32 %v2040, 2147483648
        %v2171 = vxor.u32 %v2138, 2147483648
        %v2172 = vxor.u32 %v2042, 2147483648
        %v2173 = vxor.u32 %v2140, 2147483648
        %v2174 = vmul.f32 %v2142, 1.442695
        %v2175 = vpow.pop %v2174
        %v2176 = vmul.f32 %v2143, 1.442695
        %v2177 = vpow.pop %v2176
        %v2178 = vmul.f32 %v2144, 1.442695
        %v2179 = vpow.pop %v2178
        %v2180 = vmul.f32 %v2145, 1.442695
        %v2181 = vpow.pop %v2180
        %v2182 = vmul.f32 %v2146, 1.442695
        %v2183 = vpow.pop %v2182
        %v2184 = vmul.f32 %v2147, 1.442695
        %v2185 = vpow.pop %v2184
        %v2186 = vmul.f32 %v2148, 1.442695
        %v2187 = vpow.pop %v2186
        %v2188 = vmul.f32 %v2149, 1.442695
        %v2189 = vpow.pop %v2188
        %v2190 = vmul.f32 %v2150, 1.442695
        %v2191 = vpow.pop %v2190
        %v2192 = vmul.f32 %v2151, 1.442695
        %v2193 = vpow.pop %v2192
        %v2194 = vmul.f32 %v2152, 1.442695
        %v2195 = vpow.pop %v2194
        %v2196 = vmul.f32 %v2153, 1.442695
        %v2197 = vpow.pop %v2196
        %v2198 = vmul.f32 %v2154, 1.442695
        %v2199 = vpow.pop %v2198
        %v2200 = vmul.f32 %v2155, 1.442695
        %v2201 = vpow.pop %v2200
        %v2202 = vmul.f32 %v2156, 1.442695
        %v2203 = vpow.pop %v2202
        %v2204 = vmul.f32 %v2157, 1.442695
        %v2205 = vpow.pop %v2204
        %v2206 = vmul.f32 %v2158, 1.442695
        %v2207 = vpow.pop %v2206
        %v2208 = vmul.f32 %v2159, 1.442695
        %v2209 = vpow.pop %v2208
        %v2210 = vmul.f32 %v2160, 1.442695
        %v2211 = vpow.pop %v2210
        %v2212 = vmul.f32 %v2161, 1.442695
        %v2213 = vpow.pop %v2212
        %v2214 = vmul.f32 %v2162, 1.442695
        %v2215 = vpow.pop %v2214
        %v2216 = vmul.f32 %v2163, 1.442695
        %v2217 = vpow.pop %v2216
        %v2218 = vmul.f32 %v2164, 1.442695
        %v2219 = vpow.pop %v2218
        %v2220 = vmul.f32 %v2165, 1.442695
        %v2221 = vpow.pop %v2220
        %v2222 = vmul.f32 %v2166, 1.442695
        %v2223 = vpow.pop %v2222
        %v2224 = vmul.f32 %v2167, 1.442695
        %v2225 = vpow.pop %v2224
        %v2226 = vmul.f32 %v2168, 1.442695
        %v2227 = vpow.pop %v2226
        %v2228 = vmul.f32 %v2169, 1.442695
        %v2229 = vpow.pop %v2228
        %v2230 = vmul.f32 %v2170, 1.442695
        %v2231 = vpow.pop %v2230
        %v2232 = vmul.f32 %v2171, 1.442695
        %v2233 = vpow.pop %v2232
        %v2234 = vmul.f32 %v2172, 1.442695
        %v2235 = vpow.pop %v2234
        %v2236 = vmul.f32 %v2173, 1.442695
        %v2237 = vpow.pop %v2236
        %v2238 = vadd.f32 %v2175, 1.0
        %v2239 = vadd.f32 %v2177, 1.0
        %v2240 = vadd.f32 %v2179, 1.0
        %v2241 = vadd.f32 %v2181, 1.0
        %v2242 = vadd.f32 %v2183, 1.0
        %v2243 = vadd.f32 %v2185, 1.0
        %v2244 = vadd.f32 %v2187, 1.0
        %v2245 = vadd.f32 %v2189, 1.0
        %v2246 = vadd.f32 %v2191, 1.0
        %v2247 = vadd.f32 %v2193, 1.0
        %v2248 = vadd.f32 %v2195, 1.0
        %v2249 = vadd.f32 %v2197, 1.0
        %v2250 = vadd.f32 %v2199, 1.0
        %v2251 = vadd.f32 %v2201, 1.0
        %v2252 = vadd.f32 %v2203, 1.0
        %v2253 = vadd.f32 %v2205, 1.0
        %v2254 = vadd.f32 %v2207, 1.0
        %v2255 = vadd.f32 %v2209, 1.0
        %v2256 = vadd.f32 %v2211, 1.0
        %v2257 = vadd.f32 %v2213, 1.0
        %v2258 = vadd.f32 %v2215, 1.0
        %v2259 = vadd.f32 %v2217, 1.0
        %v2260 = vadd.f32 %v2219, 1.0
        %v2261 = vadd.f32 %v2221, 1.0
        %v2262 = vadd.f32 %v2223, 1.0
        %v2263 = vadd.f32 %v2225, 1.0
        %v2264 = vadd.f32 %v2227, 1.0
        %v2265 = vadd.f32 %v2229, 1.0
        %v2266 = vadd.f32 %v2231, 1.0
        %v2267 = vadd.f32 %v2233, 1.0
        %v2268 = vadd.f32 %v2235, 1.0
        %v2269 = vadd.f32 %v2237, 1.0
        %v2270 = vrcp.pop %v2238
        %v2271 = vmul.f32 %v2238, %v2270
        %v2272 = vsub.f32 1.0, %v2271
        %v2273 = vmul.f32 %v2270, %v2272
        %v2274 = vadd.f32 %v2270, %v2273
        %vm2275 = vweird.f32 %v2238
        %vm2276 = vweird.f32 %v2270
        %vm2277 = vmor %vm2275, %vm2276
        %v2278 = vsel %vm2277, %v2270, %v2274
        %v2279 = vand.u32 2147483647, %v2238
        %vm2280 = vcmp.eq.f32.partialorder %v2279, 8.507059e+37
        %v2281 = vand.u32 %v2238, 2147483648
        %v2282 = vor.u32 1.1754944e-38, %v2281
        %v2283 = vsel %vm2280, %v2282, %v2278
        %v2284 = vmul.f32 1.0, %v2283
        %v2285 = vrcp.pop %v2239
        %v2286 = vmul.f32 %v2239, %v2285
        %v2287 = vsub.f32 1.0, %v2286
        %v2288 = vmul.f32 %v2285, %v2287
        %v2289 = vadd.f32 %v2285, %v2288
        %vm2290 = vweird.f32 %v2239
        %vm2291 = vweird.f32 %v2285
        %vm2292 = vmor %vm2290, %vm2291
        %v2293 = vsel %vm2292, %v2285, %v2289
        %v2294 = vand.u32 2147483647, %v2239
        %vm2295 = vcmp.eq.f32.partialorder %v2294, 8.507059e+37
        %v2296 = vand.u32 %v2239, 2147483648
        %v2297 = vor.u32 1.1754944e-38, %v2296
        %v2298 = vsel %vm2295, %v2297, %v2293
        %v2299 = vmul.f32 1.0, %v2298
        %v2300 = vrcp.pop %v2240
        %v2301 = vmul.f32 %v2240, %v2300
        %v2302 = vsub.f32 1.0, %v2301
        %v2303 = vmul.f32 %v2300, %v2302
        %v2304 = vadd.f32 %v2300, %v2303
        %vm2305 = vweird.f32 %v2240
        %vm2306 = vweird.f32 %v2300
        %vm2307 = vmor %vm2305, %vm2306
        %v2308 = vsel %vm2307, %v2300, %v2304
        %v2309 = vand.u32 2147483647, %v2240
        %vm2310 = vcmp.eq.f32.partialorder %v2309, 8.507059e+37
        %v2311 = vand.u32 %v2240, 2147483648
        %v2312 = vor.u32 1.1754944e-38, %v2311
        %v2313 = vsel %vm2310, %v2312, %v2308
        %v2314 = vmul.f32 1.0, %v2313
        %v2315 = vrcp.pop %v2241
        %v2316 = vmul.f32 %v2241, %v2315
        %v2317 = vsub.f32 1.0, %v2316
        %v2318 = vmul.f32 %v2315, %v2317
        %v2319 = vadd.f32 %v2315, %v2318
        %vm2320 = vweird.f32 %v2241
        %vm2321 = vweird.f32 %v2315
        %vm2322 = vmor %vm2320, %vm2321
        %v2323 = vsel %vm2322, %v2315, %v2319
        %v2324 = vand.u32 2147483647, %v2241
        %vm2325 = vcmp.eq.f32.partialorder %v2324, 8.507059e+37
        %v2326 = vand.u32 %v2241, 2147483648
        %v2327 = vor.u32 1.1754944e-38, %v2326
        %v2328 = vsel %vm2325, %v2327, %v2323
        %v2329 = vmul.f32 1.0, %v2328
        %v2330 = vrcp.pop %v2242
        %v2331 = vmul.f32 %v2242, %v2330
        %v2332 = vsub.f32 1.0, %v2331
        %v2333 = vmul.f32 %v2330, %v2332
        %v2334 = vadd.f32 %v2330, %v2333
        %vm2335 = vweird.f32 %v2242
        %vm2336 = vweird.f32 %v2330
        %vm2337 = vmor %vm2335, %vm2336
        %v2338 = vsel %vm2337, %v2330, %v2334
        %v2339 = vand.u32 2147483647, %v2242
        %vm2340 = vcmp.eq.f32.partialorder %v2339, 8.507059e+37
        %v2341 = vand.u32 %v2242, 2147483648
        %v2342 = vor.u32 1.1754944e-38, %v2341
        %v2343 = vsel %vm2340, %v2342, %v2338
        %v2344 = vmul.f32 1.0, %v2343
        %v2345 = vrcp.pop %v2243
        %v2346 = vmul.f32 %v2243, %v2345
        %v2347 = vsub.f32 1.0, %v2346
        %v2348 = vmul.f32 %v2345, %v2347
        %v2349 = vadd.f32 %v2345, %v2348
        %vm2350 = vweird.f32 %v2243
        %vm2351 = vweird.f32 %v2345
        %vm2352 = vmor %vm2350, %vm2351
        %v2353 = vsel %vm2352, %v2345, %v2349
        %v2354 = vand.u32 2147483647, %v2243
        %vm2355 = vcmp.eq.f32.partialorder %v2354, 8.507059e+37
        %v2356 = vand.u32 %v2243, 2147483648
        %v2357 = vor.u32 1.1754944e-38, %v2356
        %v2358 = vsel %vm2355, %v2357, %v2353
        %v2359 = vmul.f32 1.0, %v2358
        %v2360 = vrcp.pop %v2244
        %v2361 = vmul.f32 %v2244, %v2360
        %v2362 = vsub.f32 1.0, %v2361
        %v2363 = vmul.f32 %v2360, %v2362
        %v2364 = vadd.f32 %v2360, %v2363
        %vm2365 = vweird.f32 %v2244
        %vm2366 = vweird.f32 %v2360
        %vm2367 = vmor %vm2365, %vm2366
        %v2368 = vsel %vm2367, %v2360, %v2364
        %v2369 = vand.u32 2147483647, %v2244
        %vm2370 = vcmp.eq.f32.partialorder %v2369, 8.507059e+37
        %v2371 = vand.u32 %v2244, 2147483648
        %v2372 = vor.u32 1.1754944e-38, %v2371
        %v2373 = vsel %vm2370, %v2372, %v2368
        %v2374 = vmul.f32 1.0, %v2373
        %v2375 = vrcp.pop %v2245
        %v2376 = vmul.f32 %v2245, %v2375
        %v2377 = vsub.f32 1.0, %v2376
        %v2378 = vmul.f32 %v2375, %v2377
        %v2379 = vadd.f32 %v2375, %v2378
        %vm2380 = vweird.f32 %v2245
        %vm2381 = vweird.f32 %v2375
        %vm2382 = vmor %vm2380, %vm2381
        %v2383 = vsel %vm2382, %v2375, %v2379
        %v2384 = vand.u32 2147483647, %v2245
        %vm2385 = vcmp.eq.f32.partialorder %v2384, 8.507059e+37
        %v2386 = vand.u32 %v2245, 2147483648
        %v2387 = vor.u32 1.1754944e-38, %v2386
        %v2388 = vsel %vm2385, %v2387, %v2383
        %v2389 = vmul.f32 1.0, %v2388
        %v2390 = vrcp.pop %v2246
        %v2391 = vmul.f32 %v2246, %v2390
        %v2392 = vsub.f32 1.0, %v2391
        %v2393 = vmul.f32 %v2390, %v2392
        %v2394 = vadd.f32 %v2390, %v2393
        %vm2395 = vweird.f32 %v2246
        %vm2396 = vweird.f32 %v2390
        %vm2397 = vmor %vm2395, %vm2396
        %v2398 = vsel %vm2397, %v2390, %v2394
        %v2399 = vand.u32 2147483647, %v2246
        %vm2400 = vcmp.eq.f32.partialorder %v2399, 8.507059e+37
        %v2401 = vand.u32 %v2246, 2147483648
        %v2402 = vor.u32 1.1754944e-38, %v2401
        %v2403 = vsel %vm2400, %v2402, %v2398
        %v2404 = vmul.f32 1.0, %v2403
        %v2405 = vrcp.pop %v2247
        %v2406 = vmul.f32 %v2247, %v2405
        %v2407 = vsub.f32 1.0, %v2406
        %v2408 = vmul.f32 %v2405, %v2407
        %v2409 = vadd.f32 %v2405, %v2408
        %vm2410 = vweird.f32 %v2247
        %vm2411 = vweird.f32 %v2405
        %vm2412 = vmor %vm2410, %vm2411
        %v2413 = vsel %vm2412, %v2405, %v2409
        %v2414 = vand.u32 2147483647, %v2247
        %vm2415 = vcmp.eq.f32.partialorder %v2414, 8.507059e+37
        %v2416 = vand.u32 %v2247, 2147483648
        %v2417 = vor.u32 1.1754944e-38, %v2416
        %v2418 = vsel %vm2415, %v2417, %v2413
        %v2419 = vmul.f32 1.0, %v2418
        %v2420 = vrcp.pop %v2248
        %v2421 = vmul.f32 %v2248, %v2420
        %v2422 = vsub.f32 1.0, %v2421
        %v2423 = vmul.f32 %v2420, %v2422
        %v2424 = vadd.f32 %v2420, %v2423
        %vm2425 = vweird.f32 %v2248
        %vm2426 = vweird.f32 %v2420
        %vm2427 = vmor %vm2425, %vm2426
        %v2428 = vsel %vm2427, %v2420, %v2424
        %v2429 = vand.u32 2147483647, %v2248
        %vm2430 = vcmp.eq.f32.partialorder %v2429, 8.507059e+37
        %v2431 = vand.u32 %v2248, 2147483648
        %v2432 = vor.u32 1.1754944e-38, %v2431
        %v2433 = vsel %vm2430, %v2432, %v2428
        %v2434 = vmul.f32 1.0, %v2433
        %v2435 = vrcp.pop %v2249
        %v2436 = vmul.f32 %v2249, %v2435
        %v2437 = vsub.f32 1.0, %v2436
        %v2438 = vmul.f32 %v2435, %v2437
        %v2439 = vadd.f32 %v2435, %v2438
        %vm2440 = vweird.f32 %v2249
        %vm2441 = vweird.f32 %v2435
        %vm2442 = vmor %vm2440, %vm2441
        %v2443 = vsel %vm2442, %v2435, %v2439
        %v2444 = vand.u32 2147483647, %v2249
        %vm2445 = vcmp.eq.f32.partialorder %v2444, 8.507059e+37
        %v2446 = vand.u32 %v2249, 2147483648
        %v2447 = vor.u32 1.1754944e-38, %v2446
        %v2448 = vsel %vm2445, %v2447, %v2443
        %v2449 = vmul.f32 1.0, %v2448
        %v2450 = vrcp.pop %v2250
        %v2451 = vmul.f32 %v2250, %v2450
        %v2452 = vsub.f32 1.0, %v2451
        %v2453 = vmul.f32 %v2450, %v2452
        %v2454 = vadd.f32 %v2450, %v2453
        %vm2455 = vweird.f32 %v2250
        %vm2456 = vweird.f32 %v2450
        %vm2457 = vmor %vm2455, %vm2456
        %v2458 = vsel %vm2457, %v2450, %v2454
        %v2459 = vand.u32 2147483647, %v2250
        %vm2460 = vcmp.eq.f32.partialorder %v2459, 8.507059e+37
        %v2461 = vand.u32 %v2250, 2147483648
        %v2462 = vor.u32 1.1754944e-38, %v2461
        %v2463 = vsel %vm2460, %v2462, %v2458
        %v2464 = vmul.f32 1.0, %v2463
        %v2465 = vrcp.pop %v2251
        %v2466 = vmul.f32 %v2251, %v2465
        %v2467 = vsub.f32 1.0, %v2466
        %v2468 = vmul.f32 %v2465, %v2467
        %v2469 = vadd.f32 %v2465, %v2468
        %vm2470 = vweird.f32 %v2251
        %vm2471 = vweird.f32 %v2465
        %vm2472 = vmor %vm2470, %vm2471
        %v2473 = vsel %vm2472, %v2465, %v2469
        %v2474 = vand.u32 2147483647, %v2251
        %vm2475 = vcmp.eq.f32.partialorder %v2474, 8.507059e+37
        %v2476 = vand.u32 %v2251, 2147483648
        %v2477 = vor.u32 1.1754944e-38, %v2476
        %v2478 = vsel %vm2475, %v2477, %v2473
        %v2479 = vmul.f32 1.0, %v2478
        %v2480 = vrcp.pop %v2252
        %v2481 = vmul.f32 %v2252, %v2480
        %v2482 = vsub.f32 1.0, %v2481
        %v2483 = vmul.f32 %v2480, %v2482
        %v2484 = vadd.f32 %v2480, %v2483
        %vm2485 = vweird.f32 %v2252
        %vm2486 = vweird.f32 %v2480
        %vm2487 = vmor %vm2485, %vm2486
        %v2488 = vsel %vm2487, %v2480, %v2484
        %v2489 = vand.u32 2147483647, %v2252
        %vm2490 = vcmp.eq.f32.partialorder %v2489, 8.507059e+37
        %v2491 = vand.u32 %v2252, 2147483648
        %v2492 = vor.u32 1.1754944e-38, %v2491
        %v2493 = vsel %vm2490, %v2492, %v2488
        %v2494 = vmul.f32 1.0, %v2493
        %v2495 = vrcp.pop %v2253
        %v2496 = vmul.f32 %v2253, %v2495
        %v2497 = vsub.f32 1.0, %v2496
        %v2498 = vmul.f32 %v2495, %v2497
        %v2499 = vadd.f32 %v2495, %v2498
        %vm2500 = vweird.f32 %v2253
        %vm2501 = vweird.f32 %v2495
        %vm2502 = vmor %vm2500, %vm2501
        %v2503 = vsel %vm2502, %v2495, %v2499
        %v2504 = vand.u32 2147483647, %v2253
        %vm2505 = vcmp.eq.f32.partialorder %v2504, 8.507059e+37
        %v2506 = vand.u32 %v2253, 2147483648
        %v2507 = vor.u32 1.1754944e-38, %v2506
        %v2508 = vsel %vm2505, %v2507, %v2503
        %v2509 = vmul.f32 1.0, %v2508
        %v2510 = vrcp.pop %v2254
        %v2511 = vmul.f32 %v2254, %v2510
        %v2512 = vsub.f32 1.0, %v2511
        %v2513 = vmul.f32 %v2510, %v2512
        %v2514 = vadd.f32 %v2510, %v2513
        %vm2515 = vweird.f32 %v2254
        %vm2516 = vweird.f32 %v2510
        %vm2517 = vmor %vm2515, %vm2516
        %v2518 = vsel %vm2517, %v2510, %v2514
        %v2519 = vand.u32 2147483647, %v2254
        %vm2520 = vcmp.eq.f32.partialorder %v2519, 8.507059e+37
        %v2521 = vand.u32 %v2254, 2147483648
        %v2522 = vor.u32 1.1754944e-38, %v2521
        %v2523 = vsel %vm2520, %v2522, %v2518
        %v2524 = vmul.f32 1.0, %v2523
        %v2525 = vrcp.pop %v2255
        %v2526 = vmul.f32 %v2255, %v2525
        %v2527 = vsub.f32 1.0, %v2526
        %v2528 = vmul.f32 %v2525, %v2527
        %v2529 = vadd.f32 %v2525, %v2528
        %vm2530 = vweird.f32 %v2255
        %vm2531 = vweird.f32 %v2525
        %vm2532 = vmor %vm2530, %vm2531
        %v2533 = vsel %vm2532, %v2525, %v2529
        %v2534 = vand.u32 2147483647, %v2255
        %vm2535 = vcmp.eq.f32.partialorder %v2534, 8.507059e+37
        %v2536 = vand.u32 %v2255, 2147483648
        %v2537 = vor.u32 1.1754944e-38, %v2536
        %v2538 = vsel %vm2535, %v2537, %v2533
        %v2539 = vmul.f32 1.0, %v2538
        %v2540 = vrcp.pop %v2256
        %v2541 = vmul.f32 %v2256, %v2540
        %v2542 = vsub.f32 1.0, %v2541
        %v2543 = vmul.f32 %v2540, %v2542
        %v2544 = vadd.f32 %v2540, %v2543
        %vm2545 = vweird.f32 %v2256
        %vm2546 = vweird.f32 %v2540
        %vm2547 = vmor %vm2545, %vm2546
        %v2548 = vsel %vm2547, %v2540, %v2544
        %v2549 = vand.u32 2147483647, %v2256
        %vm2550 = vcmp.eq.f32.partialorder %v2549, 8.507059e+37
        %v2551 = vand.u32 %v2256, 2147483648
        %v2552 = vor.u32 1.1754944e-38, %v2551
        %v2553 = vsel %vm2550, %v2552, %v2548
        %v2554 = vmul.f32 1.0, %v2553
        %v2555 = vrcp.pop %v2257
        %v2556 = vmul.f32 %v2257, %v2555
        %v2557 = vsub.f32 1.0, %v2556
        %v2558 = vmul.f32 %v2555, %v2557
        %v2559 = vadd.f32 %v2555, %v2558
        %vm2560 = vweird.f32 %v2257
        %vm2561 = vweird.f32 %v2555
        %vm2562 = vmor %vm2560, %vm2561
        %v2563 = vsel %vm2562, %v2555, %v2559
        %v2564 = vand.u32 2147483647, %v2257
        %vm2565 = vcmp.eq.f32.partialorder %v2564, 8.507059e+37
        %v2566 = vand.u32 %v2257, 2147483648
        %v2567 = vor.u32 1.1754944e-38, %v2566
        %v2568 = vsel %vm2565, %v2567, %v2563
        %v2569 = vmul.f32 1.0, %v2568
        %v2570 = vrcp.pop %v2258
        %v2571 = vmul.f32 %v2258, %v2570
        %v2572 = vsub.f32 1.0, %v2571
        %v2573 = vmul.f32 %v2570, %v2572
        %v2574 = vadd.f32 %v2570, %v2573
        %vm2575 = vweird.f32 %v2258
        %vm2576 = vweird.f32 %v2570
        %vm2577 = vmor %vm2575, %vm2576
        %v2578 = vsel %vm2577, %v2570, %v2574
        %v2579 = vand.u32 2147483647, %v2258
        %vm2580 = vcmp.eq.f32.partialorder %v2579, 8.507059e+37
        %v2581 = vand.u32 %v2258, 2147483648
        %v2582 = vor.u32 1.1754944e-38, %v2581
        %v2583 = vsel %vm2580, %v2582, %v2578
        %v2584 = vmul.f32 1.0, %v2583
        %v2585 = vrcp.pop %v2259
        %v2586 = vmul.f32 %v2259, %v2585
        %v2587 = vsub.f32 1.0, %v2586
        %v2588 = vmul.f32 %v2585, %v2587
        %v2589 = vadd.f32 %v2585, %v2588
        %vm2590 = vweird.f32 %v2259
        %vm2591 = vweird.f32 %v2585
        %vm2592 = vmor %vm2590, %vm2591
        %v2593 = vsel %vm2592, %v2585, %v2589
        %v2594 = vand.u32 2147483647, %v2259
        %vm2595 = vcmp.eq.f32.partialorder %v2594, 8.507059e+37
        %v2596 = vand.u32 %v2259, 2147483648
        %v2597 = vor.u32 1.1754944e-38, %v2596
        %v2598 = vsel %vm2595, %v2597, %v2593
        %v2599 = vmul.f32 1.0, %v2598
        %v2600 = vrcp.pop %v2260
        %v2601 = vmul.f32 %v2260, %v2600
        %v2602 = vsub.f32 1.0, %v2601
        %v2603 = vmul.f32 %v2600, %v2602
        %v2604 = vadd.f32 %v2600, %v2603
        %vm2605 = vweird.f32 %v2260
        %vm2606 = vweird.f32 %v2600
        %vm2607 = vmor %vm2605, %vm2606
        %v2608 = vsel %vm2607, %v2600, %v2604
        %v2609 = vand.u32 2147483647, %v2260
        %vm2610 = vcmp.eq.f32.partialorder %v2609, 8.507059e+37
        %v2611 = vand.u32 %v2260, 2147483648
        %v2612 = vor.u32 1.1754944e-38, %v2611
        %v2613 = vsel %vm2610, %v2612, %v2608
        %v2614 = vmul.f32 1.0, %v2613
        %v2615 = vrcp.pop %v2261
        %v2616 = vmul.f32 %v2261, %v2615
        %v2617 = vsub.f32 1.0, %v2616
        %v2618 = vmul.f32 %v2615, %v2617
        %v2619 = vadd.f32 %v2615, %v2618
        %vm2620 = vweird.f32 %v2261
        %vm2621 = vweird.f32 %v2615
        %vm2622 = vmor %vm2620, %vm2621
        %v2623 = vsel %vm2622, %v2615, %v2619
        %v2624 = vand.u32 2147483647, %v2261
        %vm2625 = vcmp.eq.f32.partialorder %v2624, 8.507059e+37
        %v2626 = vand.u32 %v2261, 2147483648
        %v2627 = vor.u32 1.1754944e-38, %v2626
        %v2628 = vsel %vm2625, %v2627, %v2623
        %v2629 = vmul.f32 1.0, %v2628
        %v2630 = vrcp.pop %v2262
        %v2631 = vmul.f32 %v2262, %v2630
        %v2632 = vsub.f32 1.0, %v2631
        %v2633 = vmul.f32 %v2630, %v2632
        %v2634 = vadd.f32 %v2630, %v2633
        %vm2635 = vweird.f32 %v2262
        %vm2636 = vweird.f32 %v2630
        %vm2637 = vmor %vm2635, %vm2636
        %v2638 = vsel %vm2637, %v2630, %v2634
        %v2639 = vand.u32 2147483647, %v2262
        %vm2640 = vcmp.eq.f32.partialorder %v2639, 8.507059e+37
        %v2641 = vand.u32 %v2262, 2147483648
        %v2642 = vor.u32 1.1754944e-38, %v2641
        %v2643 = vsel %vm2640, %v2642, %v2638
        %v2644 = vmul.f32 1.0, %v2643
        %v2645 = vrcp.pop %v2263
        %v2646 = vmul.f32 %v2263, %v2645
        %v2647 = vsub.f32 1.0, %v2646
        %v2648 = vmul.f32 %v2645, %v2647
        %v2649 = vadd.f32 %v2645, %v2648
        %vm2650 = vweird.f32 %v2263
        %vm2651 = vweird.f32 %v2645
        %vm2652 = vmor %vm2650, %vm2651
        %v2653 = vsel %vm2652, %v2645, %v2649
        %v2654 = vand.u32 2147483647, %v2263
        %vm2655 = vcmp.eq.f32.partialorder %v2654, 8.507059e+37
        %v2656 = vand.u32 %v2263, 2147483648
        %v2657 = vor.u32 1.1754944e-38, %v2656
        %v2658 = vsel %vm2655, %v2657, %v2653
        %v2659 = vmul.f32 1.0, %v2658
        %v2660 = vrcp.pop %v2264
        %v2661 = vmul.f32 %v2264, %v2660
        %v2662 = vsub.f32 1.0, %v2661
        %v2663 = vmul.f32 %v2660, %v2662
        %v2664 = vadd.f32 %v2660, %v2663
        %vm2665 = vweird.f32 %v2264
        %vm2666 = vweird.f32 %v2660
        %vm2667 = vmor %vm2665, %vm2666
        %v2668 = vsel %vm2667, %v2660, %v2664
        %v2669 = vand.u32 2147483647, %v2264
        %vm2670 = vcmp.eq.f32.partialorder %v2669, 8.507059e+37
        %v2671 = vand.u32 %v2264, 2147483648
        %v2672 = vor.u32 1.1754944e-38, %v2671
        %v2673 = vsel %vm2670, %v2672, %v2668
        %v2674 = vmul.f32 1.0, %v2673
        %v2675 = vrcp.pop %v2265
        %v2676 = vmul.f32 %v2265, %v2675
        %v2677 = vsub.f32 1.0, %v2676
        %v2678 = vmul.f32 %v2675, %v2677
        %v2679 = vadd.f32 %v2675, %v2678
        %vm2680 = vweird.f32 %v2265
        %vm2681 = vweird.f32 %v2675
        %vm2682 = vmor %vm2680, %vm2681
        %v2683 = vsel %vm2682, %v2675, %v2679
        %v2684 = vand.u32 2147483647, %v2265
        %vm2685 = vcmp.eq.f32.partialorder %v2684, 8.507059e+37
        %v2686 = vand.u32 %v2265, 2147483648
        %v2687 = vor.u32 1.1754944e-38, %v2686
        %v2688 = vsel %vm2685, %v2687, %v2683
        %v2689 = vmul.f32 1.0, %v2688
        %v2690 = vrcp.pop %v2266
        %v2691 = vmul.f32 %v2266, %v2690
        %v2692 = vsub.f32 1.0, %v2691
        %v2693 = vmul.f32 %v2690, %v2692
        %v2694 = vadd.f32 %v2690, %v2693
        %vm2695 = vweird.f32 %v2266
        %vm2696 = vweird.f32 %v2690
        %vm2697 = vmor %vm2695, %vm2696
        %v2698 = vsel %vm2697, %v2690, %v2694
        %v2699 = vand.u32 2147483647, %v2266
        %vm2700 = vcmp.eq.f32.partialorder %v2699, 8.507059e+37
        %v2701 = vand.u32 %v2266, 2147483648
        %v2702 = vor.u32 1.1754944e-38, %v2701
        %v2703 = vsel %vm2700, %v2702, %v2698
        %v2704 = vmul.f32 1.0, %v2703
        %v2705 = vrcp.pop %v2267
        %v2706 = vmul.f32 %v2267, %v2705
        %v2707 = vsub.f32 1.0, %v2706
        %v2708 = vmul.f32 %v2705, %v2707
        %v2709 = vadd.f32 %v2705, %v2708
        %vm2710 = vweird.f32 %v2267
        %vm2711 = vweird.f32 %v2705
        %vm2712 = vmor %vm2710, %vm2711
        %v2713 = vsel %vm2712, %v2705, %v2709
        %v2714 = vand.u32 2147483647, %v2267
        %vm2715 = vcmp.eq.f32.partialorder %v2714, 8.507059e+37
        %v2716 = vand.u32 %v2267, 2147483648
        %v2717 = vor.u32 1.1754944e-38, %v2716
        %v2718 = vsel %vm2715, %v2717, %v2713
        %v2719 = vmul.f32 1.0, %v2718
        %v2720 = vrcp.pop %v2268
        %v2721 = vmul.f32 %v2268, %v2720
        %v2722 = vsub.f32 1.0, %v2721
        %v2723 = vmul.f32 %v2720, %v2722
        %v2724 = vadd.f32 %v2720, %v2723
        %vm2725 = vweird.f32 %v2268
        %vm2726 = vweird.f32 %v2720
        %vm2727 = vmor %vm2725, %vm2726
        %v2728 = vsel %vm2727, %v2720, %v2724
        %v2729 = vand.u32 2147483647, %v2268
        %vm2730 = vcmp.eq.f32.partialorder %v2729, 8.507059e+37
        %v2731 = vand.u32 %v2268, 2147483648
        %v2732 = vor.u32 1.1754944e-38, %v2731
        %v2733 = vsel %vm2730, %v2732, %v2728
        %v2734 = vmul.f32 1.0, %v2733
        %v2735 = vrcp.pop %v2269
        %v2736 = vmul.f32 %v2269, %v2735
        %v2737 = vsub.f32 1.0, %v2736
        %v2738 = vmul.f32 %v2735, %v2737
        %v2739 = vadd.f32 %v2735, %v2738
        %vm2740 = vweird.f32 %v2269
        %vm2741 = vweird.f32 %v2735
        %vm2742 = vmor %vm2740, %vm2741
        %v2743 = vsel %vm2742, %v2735, %v2739
        %v2744 = vand.u32 2147483647, %v2269
        %vm2745 = vcmp.eq.f32.partialorder %v2744, 8.507059e+37
        %v2746 = vand.u32 %v2269, 2147483648
        %v2747 = vor.u32 1.1754944e-38, %v2746
        %v2748 = vsel %vm2745, %v2747, %v2743
        %v2749 = vmul.f32 1.0, %v2748
        %v2750 = vpack.c.bf16 %v2314, %v2284
        %v2751 = vpack.c.bf16 %v2329, %v2299
        %v2752 = vpack.c.bf16 %v2374, %v2344
        %v2753 = vpack.c.bf16 %v2389, %v2359
        %v2754 = vpack.c.bf16 %v2434, %v2404
        %v2755 = vpack.c.bf16 %v2449, %v2419
        %v2756 = vpack.c.bf16 %v2494, %v2464
        %v2757 = vpack.c.bf16 %v2509, %v2479
        %v2758 = vpack.c.bf16 %v2554, %v2524
        %v2759 = vpack.c.bf16 %v2569, %v2539
        %v2760 = vpack.c.bf16 %v2614, %v2584
        %v2761 = vpack.c.bf16 %v2629, %v2599
        %v2762 = vpack.c.bf16 %v2674, %v2644
        %v2763 = vpack.c.bf16 %v2689, %v2659
        %v2764 = vpack.c.bf16 %v2734, %v2704
        %v2765 = vpack.c.bf16 %v2749, %v2719
        %2766 = vmatpush.bf16.msra.mxu0 %v1567
        %2767 = vmatpush.bf16.msra.mxu0 %v1565
        %2768 = vmatpush.bf16.msra.mxu0 %v1563
        %2769 = vmatpush.bf16.msra.mxu0 %v1561
        %2770 = vmatpush.bf16.msra.mxu0 %v1559
        %2771 = vmatpush.bf16.msra.mxu0 %v1557
        %2772 = vmatpush.bf16.msra.mxu0 %v1555
        %2773 = vmatpush.bf16.msra.mxu0 %v1553
        %2774 = vmatmul.bf16.gmra.mxu0 %v2750
        %v2775 = vpop.f32.mrf.mxu0
        %v2776 = vadd.f32 %v1455, %v2775
        %v2777 = vpop.f32.mrf.mxu0
        %v2778 = vadd.f32 %v1455, %v2777
        %2779 = vmatmul.bf16.gmra.mxu0 %v2752
        %v2780 = vpop.f32.mrf.mxu0
        %v2781 = vadd.f32 %v1455, %v2780
        %v2782 = vpop.f32.mrf.mxu0
        %v2783 = vadd.f32 %v1455, %v2782
        %2784 = vmatmul.bf16.gmra.mxu0 %v2754
        %v2785 = vpop.f32.mrf.mxu0
        %v2786 = vadd.f32 %v1455, %v2785
        %v2787 = vpop.f32.mrf.mxu0
        %v2788 = vadd.f32 %v1455, %v2787
        %2789 = vmatmul.bf16.gmra.mxu0 %v2756
        %v2790 = vpop.f32.mrf.mxu0
        %v2791 = vadd.f32 %v1455, %v2790
        %v2792 = vpop.f32.mrf.mxu0
        %v2793 = vadd.f32 %v1455, %v2792
        %2794 = vmatmul.bf16.gmra.mxu0 %v2758
        %v2795 = vpop.f32.mrf.mxu0
        %v2796 = vadd.f32 %v1455, %v2795
        %v2797 = vpop.f32.mrf.mxu0
        %v2798 = vadd.f32 %v1455, %v2797
        %2799 = vmatmul.bf16.gmra.mxu0 %v2760
        %v2800 = vpop.f32.mrf.mxu0
        %v2801 = vadd.f32 %v1455, %v2800
        %v2802 = vpop.f32.mrf.mxu0
        %v2803 = vadd.f32 %v1455, %v2802
        %2804 = vmatmul.bf16.gmra.mxu0 %v2762
        %v2805 = vpop.f32.mrf.mxu0
        %v2806 = vadd.f32 %v1455, %v2805
        %v2807 = vpop.f32.mrf.mxu0
        %v2808 = vadd.f32 %v1455, %v2807
        %2809 = vmatmul.bf16.gmra.mxu0 %v2764
        %v2810 = vpop.f32.mrf.mxu0
        %v2811 = vadd.f32 %v1455, %v2810
        %v2812 = vpop.f32.mrf.mxu0
        %v2813 = vadd.f32 %v1455, %v2812
        %2814 = vdwg.mxu0
        %2815 = vmatpush.bf16.msra.mxu0 %v1583
        %2816 = vmatpush.bf16.msra.mxu0 %v1581
        %2817 = vmatpush.bf16.msra.mxu0 %v1579
        %2818 = vmatpush.bf16.msra.mxu0 %v1577
        %2819 = vmatpush.bf16.msra.mxu0 %v1575
        %2820 = vmatpush.bf16.msra.mxu0 %v1573
        %2821 = vmatpush.bf16.msra.mxu0 %v1571
        %2822 = vmatpush.bf16.msra.mxu0 %v1569
        %2823 = vmatmul.bf16.gmra.mxu0 %v2751
        %v2824 = vpop.f32.mrf.mxu0
        %v2825 = vadd.f32 %v2776, %v2824
        %v2826 = vpop.f32.mrf.mxu0
        %v2827 = vadd.f32 %v2778, %v2826
        %2828 = vmatmul.bf16.gmra.mxu0 %v2753
        %v2829 = vpop.f32.mrf.mxu0
        %v2830 = vadd.f32 %v2781, %v2829
        %v2831 = vpop.f32.mrf.mxu0
        %v2832 = vadd.f32 %v2783, %v2831
        %2833 = vmatmul.bf16.gmra.mxu0 %v2755
        %v2834 = vpop.f32.mrf.mxu0
        %v2835 = vadd.f32 %v2786, %v2834
        %v2836 = vpop.f32.mrf.mxu0
        %v2837 = vadd.f32 %v2788, %v2836
        %2838 = vmatmul.bf16.gmra.mxu0 %v2757
        %v2839 = vpop.f32.mrf.mxu0
        %v2840 = vadd.f32 %v2791, %v2839
        %v2841 = vpop.f32.mrf.mxu0
        %v2842 = vadd.f32 %v2793, %v2841
        %2843 = vmatmul.bf16.gmra.mxu0 %v2759
        %v2844 = vpop.f32.mrf.mxu0
        %v2845 = vadd.f32 %v2796, %v2844
        %v2846 = vpop.f32.mrf.mxu0
        %v2847 = vadd.f32 %v2798, %v2846
        %2848 = vmatmul.bf16.gmra.mxu0 %v2761
        %v2849 = vpop.f32.mrf.mxu0
        %v2850 = vadd.f32 %v2801, %v2849
        %v2851 = vpop.f32.mrf.mxu0
        %v2852 = vadd.f32 %v2803, %v2851
        %2853 = vmatmul.bf16.gmra.mxu0 %v2763
        %v2854 = vpop.f32.mrf.mxu0
        %v2855 = vadd.f32 %v2806, %v2854
        %v2856 = vpop.f32.mrf.mxu0
        %v2857 = vadd.f32 %v2808, %v2856
        %2858 = vmatmul.bf16.gmra.mxu0 %v2765
        %v2859 = vpop.f32.mrf.mxu0
        %v2860 = vadd.f32 %v2811, %v2859
        %v2861 = vpop.f32.mrf.mxu0
        %v2862 = vadd.f32 %v2813, %v2861
        %2863 = vdwg.mxu0
        %2864 = vmatpush.bf16.msra.mxu0 %v1568
        %2865 = vmatpush.bf16.msra.mxu0 %v1566
        %2866 = vmatpush.bf16.msra.mxu0 %v1564
        %2867 = vmatpush.bf16.msra.mxu0 %v1562
        %2868 = vmatpush.bf16.msra.mxu0 %v1560
        %2869 = vmatpush.bf16.msra.mxu0 %v1558
        %2870 = vmatpush.bf16.msra.mxu0 %v1556
        %2871 = vmatpush.bf16.msra.mxu0 %v1554
        %2872 = vmatmul.bf16.gmra.mxu0 %v2750
        %v2873 = vpop.f32.mrf.mxu0
        %v2874 = vadd.f32 %v1456, %v2873
        %v2875 = vpop.f32.mrf.mxu0
        %v2876 = vadd.f32 %v1456, %v2875
        %2877 = vmatmul.bf16.gmra.mxu0 %v2752
        %v2878 = vpop.f32.mrf.mxu0
        %v2879 = vadd.f32 %v1456, %v2878
        %v2880 = vpop.f32.mrf.mxu0
        %v2881 = vadd.f32 %v1456, %v2880
        %2882 = vmatmul.bf16.gmra.mxu0 %v2754
        %v2883 = vpop.f32.mrf.mxu0
        %v2884 = vadd.f32 %v1456, %v2883
        %v2885 = vpop.f32.mrf.mxu0
        %v2886 = vadd.f32 %v1456, %v2885
        %2887 = vmatmul.bf16.gmra.mxu0 %v2756
        %v2888 = vpop.f32.mrf.mxu0
        %v2889 = vadd.f32 %v1456, %v2888
        %v2890 = vpop.f32.mrf.mxu0
        %v2891 = vadd.f32 %v1456, %v2890
        %2892 = vmatmul.bf16.gmra.mxu0 %v2758
        %v2893 = vpop.f32.mrf.mxu0
        %v2894 = vadd.f32 %v1456, %v2893
        %v2895 = vpop.f32.mrf.mxu0
        %v2896 = vadd.f32 %v1456, %v2895
        %2897 = vmatmul.bf16.gmra.mxu0 %v2760
        %v2898 = vpop.f32.mrf.mxu0
        %v2899 = vadd.f32 %v1456, %v2898
        %v2900 = vpop.f32.mrf.mxu0
        %v2901 = vadd.f32 %v1456, %v2900
        %2902 = vmatmul.bf16.gmra.mxu0 %v2762
        %v2903 = vpop.f32.mrf.mxu0
        %v2904 = vadd.f32 %v1456, %v2903
        %v2905 = vpop.f32.mrf.mxu0
        %v2906 = vadd.f32 %v1456, %v2905
        %2907 = vmatmul.bf16.gmra.mxu0 %v2764
        %v2908 = vpop.f32.mrf.mxu0
        %v2909 = vadd.f32 %v1456, %v2908
        %v2910 = vpop.f32.mrf.mxu0
        %v2911 = vadd.f32 %v1456, %v2910
        %2912 = vdwg.mxu0
        %2913 = vmatpush.bf16.msra.mxu0 %v1584
        %2914 = vmatpush.bf16.msra.mxu0 %v1582
        %2915 = vmatpush.bf16.msra.mxu0 %v1580
        %2916 = vmatpush.bf16.msra.mxu0 %v1578
        %2917 = vmatpush.bf16.msra.mxu0 %v1576
        %2918 = vmatpush.bf16.msra.mxu0 %v1574
        %2919 = vmatpush.bf16.msra.mxu0 %v1572
        %2920 = vmatpush.bf16.msra.mxu0 %v1570
        %2921 = vmatmul.bf16.gmra.mxu0 %v2751
        %v2922 = vpop.f32.mrf.mxu0
        %v2923 = vadd.f32 %v2874, %v2922
        %v2924 = vpop.f32.mrf.mxu0
        %v2925 = vadd.f32 %v2876, %v2924
        %2926 = vmatmul.bf16.gmra.mxu0 %v2753
        %v2927 = vpop.f32.mrf.mxu0
        %v2928 = vadd.f32 %v2879, %v2927
        %v2929 = vpop.f32.mrf.mxu0
        %v2930 = vadd.f32 %v2881, %v2929
        %2931 = vmatmul.bf16.gmra.mxu0 %v2755
        %v2932 = vpop.f32.mrf.mxu0
        %v2933 = vadd.f32 %v2884, %v2932
        %v2934 = vpop.f32.mrf.mxu0
        %v2935 = vadd.f32 %v2886, %v2934
        %2936 = vmatmul.bf16.gmra.mxu0 %v2757
        %v2937 = vpop.f32.mrf.mxu0
        %v2938 = vadd.f32 %v2889, %v2937
        %v2939 = vpop.f32.mrf.mxu0
        %v2940 = vadd.f32 %v2891, %v2939
        %2941 = vmatmul.bf16.gmra.mxu0 %v2759
        %v2942 = vpop.f32.mrf.mxu0
        %v2943 = vadd.f32 %v2894, %v2942
        %v2944 = vpop.f32.mrf.mxu0
        %v2945 = vadd.f32 %v2896, %v2944
        %2946 = vmatmul.bf16.gmra.mxu0 %v2761
        %v2947 = vpop.f32.mrf.mxu0
        %v2948 = vadd.f32 %v2899, %v2947
        %v2949 = vpop.f32.mrf.mxu0
        %v2950 = vadd.f32 %v2901, %v2949
        %2951 = vmatmul.bf16.gmra.mxu0 %v2763
        %v2952 = vpop.f32.mrf.mxu0
        %v2953 = vadd.f32 %v2904, %v2952
        %v2954 = vpop.f32.mrf.mxu0
        %v2955 = vadd.f32 %v2906, %v2954
        %2956 = vmatmul.bf16.gmra.mxu0 %v2765
        %v2957 = vpop.f32.mrf.mxu0
        %v2958 = vadd.f32 %v2909, %v2957
        %v2959 = vpop.f32.mrf.mxu0
        %v2960 = vadd.f32 %v2911, %v2959
        %2961 = vdwg.mxu0
        %v2962 = vpack.c.bf16 %v2923, %v2825
        %v2963 = vpack.c.bf16 %v2925, %v2827
        %v2964 = vpack.c.bf16 %v2928, %v2830
        %v2965 = vpack.c.bf16 %v2930, %v2832
        %v2966 = vpack.c.bf16 %v2933, %v2835
        %v2967 = vpack.c.bf16 %v2935, %v2837
        %v2968 = vpack.c.bf16 %v2938, %v2840
        %v2969 = vpack.c.bf16 %v2940, %v2842
        %v2970 = vpack.c.bf16 %v2943, %v2845
        %v2971 = vpack.c.bf16 %v2945, %v2847
        %v2972 = vpack.c.bf16 %v2948, %v2850
        %v2973 = vpack.c.bf16 %v2950, %v2852
        %v2974 = vpack.c.bf16 %v2953, %v2855
        %v2975 = vpack.c.bf16 %v2955, %v2857
        %v2976 = vpack.c.bf16 %v2958, %v2860
        %v2977 = vpack.c.bf16 %v2960, %v2862
        %s2978 = smul.addr %s1847, 4
        %s2979 = scalar_lea.vmem %s293, %s2978 [#allocation10]
        %2980 = vst [vmem:[%s2979] sm:$0xff] %v2962
        %2981 = vst [vmem:[%s2979 + $0x8] sm:$0xff] %v2963
        %2982 = vst [vmem:[%s2979 + $0x10] sm:$0xff] %v2964
        %2983 = vst [vmem:[%s2979 + $0x18] sm:$0xff] %v2965
        %2984 = vst [vmem:[%s2979 + $0x20] sm:$0xff] %v2966
        %2985 = vst [vmem:[%s2979 + $0x28] sm:$0xff] %v2967
        %2986 = vst [vmem:[%s2979 + $0x30] sm:$0xff] %v2968
        %2987 = vst [vmem:[%s2979 + $0x38] sm:$0xff] %v2969
        %2988 = vst [vmem:[%s2979 + $0x40] sm:$0xff] %v2970
        %2989 = vst [vmem:[%s2979 + $0x48] sm:$0xff] %v2971
        %2990 = vst [vmem:[%s2979 + $0x50] sm:$0xff] %v2972
        %2991 = vst [vmem:[%s2979 + $0x58] sm:$0xff] %v2973
        %2992 = vst [vmem:[%s2979 + $0x60] sm:$0xff] %v2974
        %2993 = vst [vmem:[%s2979 + $0x68] sm:$0xff] %v2975
        %2994 = vst [vmem:[%s2979 + $0x70] sm:$0xff] %v2976
        %2995 = vst [vmem:[%s2979 + $0x78] sm:$0xff] %v2977
        %s2996 = sand.u32 %s142, 1
        %s2997 = scalar_lea.sflag [#allocation4], %s2996
        %s2998 = sand.u32 %s142, 1
        %s2999 = smul.addr %s2998, 256
        %s3000 = scalar_lea.vmem [#allocation10], %s2999
        // Predicated region
        $region57: #{tpu_custom_call.1} parent=39 // pred_check
          %p3001 = pneg %p152
        $region58: #{tpu_custom_call.1} parent=39 // pred_check_branch
          %3003 = sbr.rel (%p3001) target = $region60
        $region59: #{tpu_custom_call.1} parent=39 // pred_region
          %s3004 = smul.u32 32, %s24
          %3006 = vsyncadd %s2997, 0
          %s3007 = smul.addr %s3004, 2
          %s3008 = smul.addr %s3007, 4
          %s3009 = scalar_lea.hbm %s5, %s3008
          %s3010 = sshll.u32 %s3000, 4
          %s3011 = int_to_ptr.vmem [resolvable:$true] %s3010
          %s3012 = sshll.u32 %s3009, 4
          %s3013 = int_to_ptr.hbm [resolvable:$true] %s3012
          %3018 = dma.vmem_to_hbm [thread:$0]  %s3011, 4096, %s3013, %s2997, 128, 128, 8
        $region60: #{tpu_custom_call.1} parent=39 // pred_fallthru
          _
      $region40: #{tpu_custom_call.1} parent=5 // pred_fallthru
        _
      %p3019 = scmp.le.s32.totalorder 2, %s19
      // Predicated region
      $region61: #{tpu_custom_call.1} parent=5 // pred_check
        %p3020 = pneg %p3019
      $region62: #{tpu_custom_call.1} parent=5 // pred_check_branch
        %3022 = sbr.rel (%p3020) target = $region64
      $region63: #{tpu_custom_call.1} parent=5 // pred_region
        %s3023 = ssub.s32 %s19, 2
        // Predicated region
        $region65: #{tpu_custom_call.1} parent=63 // pred_check
          %p3024 = pneg %p158
        $region66: #{tpu_custom_call.1} parent=63 // pred_check_branch
          %3026 = sbr.rel (%p3024) target = $region68
        $region67: #{tpu_custom_call.1} parent=63 // pred_region
          %s3027 = sand.u32 %s143, 1
          %s3028 = scalar_lea.sflag [#allocation4], %s3027
          %s3029 = sand.u32 %s143, 1
          %s3030 = smul.addr %s3029, 256
          %s3031 = scalar_lea.vmem [#allocation10], %s3030
          %3033 = dma.done %s3028, 4096
        $region68: #{tpu_custom_call.1} parent=63 // pred_fallthru
          _
      $region64: #{tpu_custom_call.1} parent=5 // pred_fallthru
        _
    $region6: #{tpu_custom_call.1} parent=1 // loop_footer
      %s23 = sadd.s32 1, %s19
    $region7: #{tpu_custom_call.1} parent=1 // loop_footer_branch
      %18 = sbr.rel target = $region3
    $region8: #{tpu_custom_call.1} parent=1 // loop_exit
      _
    %3034 = vsyncpa [#allocation3], 1
    %s3035 = scalar_lea.sflag [#allocation3], 1
    %3036 = vsyncpa %s3035, 1
    %3037 = vsyncpa [#allocation6], 1
    %3038 = vsyncpa [#allocation9], 1
    %3039 = vsyncpa [#allocation4], 1
    %s3040 = scalar_lea.sflag [#allocation4], 1
    %3041 = vsyncpa %s3040, 1

</llo_original>
